<compile_context>
chip_gen: v7x
topology: tpu7x:2x2x1
jax: 0.10.0
libtpu: 0.0.40
codegen_flags: <defaults>
</compile_context>

<pallas_src>
import functools

import jax
import jax.numpy as jnp
from jax.experimental import pallas as pl
from jax.experimental.pallas import tpu as pltpu


# ----------------------------- Pallas kernel ------------------------------ #
def _resblock_kernel(x_ref, w1_ref, b1_ref, w2_ref, b2_ref, mask_ref,
                     o_ref, slab_ref, patch_ref, *, H, W, pad, nb,
                     use_bf16_mxu):
    """One block of `nb` images per grid step.

    x_ref    : (nb, C, H*W)        inputs (channels on sublanes, flat spatial on lanes)
    w1_ref   : (C, 9*C)            conv1 weights, (Cout, tap-major stacked Cin)
    b1_ref   : (C, 1)              conv1 bias
    w2_ref   : (C, 9*C)            conv2 weights
    b2_ref   : (C, 1)              conv2 bias
    mask_ref : (9, nb*H*W)         per-tap SAME-padding / image-boundary masks
    o_ref    : (nb, C, H*W)        output
    slab_ref : (C, pad+nb*H*W+pad) VMEM halo slab holding the current signal
    patch_ref: (9*C, nb*H*W)       VMEM stacked-K patch for the single GEMM
    """
    C = o_ref.shape[1]
    HW = H * W
    L = nb * HW

    # Zero only the two end halos (interior is fully overwritten below; every
    # out-of-image read either lands here or is zeroed by a mask).  Done every
    # step so it is correct no matter which core runs which grid index.
    halo = jnp.zeros((C, pad), jnp.float32)
    slab_ref[:, pl.ds(0, pad)] = halo
    slab_ref[:, pl.ds(pad + L, pad)] = halo

    # Pack the nb images onto the lane axis of the slab interior (aligned stores).
    for n in range(nb):
        slab_ref[:, pl.ds(pad + n * HW, HW)] = x_ref[n]

    def conv3x3(w_ref):
        # Build the stacked-K patch: one shifted (and edge-masked) window per tap.
        for kdy in range(3):
            for kdx in range(3):
                t = kdy * 3 + kdx
                off = (kdy - 1) * W + (kdx - 1)
                p = slab_ref[:, pl.ds(pad + off, L)]            # (C, L)
                if t != 4:                                      # center tap: no mask
                    p = p * mask_ref[pl.ds(t, 1), :]            # (1, L) broadcast
                patch_ref[pl.ds(t * C, C), :] = p
        lhs = w_ref[...]                                        # (C, 9C)
        rhs = patch_ref[...]                                    # (9C, L)
        if use_bf16_mxu:
            # bf16 MXU path for v6e/v7x at larger C; keep f32 accumulation.
            lhs = lhs.astype(jnp.bfloat16)
            rhs = rhs.astype(jnp.bfloat16)
        return jax.lax.dot_general(lhs, rhs, (((1,), (0,)), ((), ())),
                                   preferred_element_type=jnp.float32)

    # --- conv1 + bias + ReLU ---
    h1 = jnp.maximum(conv3x3(w1_ref) + b1_ref[...], 0.0)        # (C, L) f32

    # --- conv2 + bias (runs on h1: single aligned interior overwrite) ---
    slab_ref[:, pl.ds(pad, L)] = h1
    out = conv3x3(w2_ref) + b2_ref[...]                         # (C, L) f32

    # Residual add folded into the per-image, lane-dense output stores.
    for n in range(nb):
        o_ref[n] = (out[:, n * HW:(n + 1) * HW] + x_ref[n]).astype(o_ref.dtype)


# ------------------------------- wrapper ---------------------------------- #
def resblock_forward(x_nchw, w1, b1, w2, b2, *, max_images_per_block=8,
                     use_bf16_mxu=False):
    """ResBlock forward. x_nchw: (N,C,H,W) f32; w*: (3,3,Cin,Cout) HWIO; b*: (C,)."""
    N, C, H, W = x_nchw.shape
    HW = H * W

    # Images per grid step: largest divisor of N not exceeding the cap.
    nb = 1
    for d in range(1, min(N, max_images_per_block) + 1):
        if N % d == 0:
            nb = d
    L = nb * HW

    # Halo >= W+1; rounded to 128 so all interior loads/stores stay lane-aligned.
    pad = ((W + 1 + 127) // 128) * 128

    x_flat = x_nchw.reshape(N, C, HW)              # free reshape, no HBM pass

    # (kh, kw, Cin, Cout) -> (Cout, 9*Cin), tap-major along the contraction axis.
    ws1 = jnp.transpose(w1, (3, 0, 1, 2)).reshape(C, 9 * C)
    ws2 = jnp.transpose(w2, (3, 0, 1, 2)).reshape(C, 9 * C)
    b1c = b1.reshape(C, 1)
    b2c = b2.reshape(C, 1)

    # Per-tap SAME-padding / image-boundary masks over the packed lane axis.
    idx = jnp.arange(L, dtype=jnp.int32)
    hh = (idx % HW) // W
    ww = idx % W
    ones = jnp.ones((L,), dtype=bool)
    row_ok = [hh != 0, ones, hh != H - 1]          # kdy = 0, 1, 2
    col_ok = [ww != 0, ones, ww != W - 1]          # kdx = 0, 1, 2
    masks = jnp.stack([(row_ok[kdy] & col_ok[kdx]).astype(jnp.float32)
                       for kdy in range(3) for kdx in range(3)], axis=0)  # (9, L)

    out_flat = pl.pallas_call(
        functools.partial(_resblock_kernel, H=H, W=W, pad=pad, nb=nb,
                          use_bf16_mxu=use_bf16_mxu),
        out_shape=jax.ShapeDtypeStruct((N, C, HW), jnp.float32),
        grid_spec=pltpu.PrefetchScalarGridSpec(
            num_scalar_prefetch=0,
            grid=(N // nb,),
            in_specs=[
                pl.BlockSpec((nb, C, HW), lambda i: (i, 0, 0)),
                pl.BlockSpec((C, 9 * C), lambda i: (0, 0)),
                pl.BlockSpec((C, 1), lambda i: (0, 0)),
                pl.BlockSpec((C, 9 * C), lambda i: (0, 0)),
                pl.BlockSpec((C, 1), lambda i: (0, 0)),
                pl.BlockSpec((9, L), lambda i: (0, 0)),
            ],
            out_specs=pl.BlockSpec((nb, C, HW), lambda i: (i, 0, 0)),
            scratch_shapes=[
                pltpu.VMEM((C, pad + L + pad), jnp.float32),   # halo slab
                pltpu.VMEM((9 * C, L), jnp.float32),           # stacked-K patch
            ],
        ),
        compiler_params=pltpu.CompilerParams(
            dimension_semantics=("parallel",),
            vmem_limit_bytes=32 * 1024 * 1024),
    )(x_flat, ws1, b1c, ws2, b2c, masks)

    return out_flat.reshape(N, C, H, W)


# --------------------------- pure-JAX reference ---------------------------- #
def _resblock_ref(x_nchw, w1, b1, w2, b2):
    x = jnp.transpose(x_nchw, (0, 2, 3, 1))
    dn = jax.lax.conv_dimension_numbers(x.shape, w1.shape,
                                        ('NHWC', 'HWIO', 'NHWC'))
    h = jax.lax.conv_general_dilated(x, w1, (1, 1), 'SAME',
                                     dimension_numbers=dn) + b1
    h = jnp.maximum(h, 0.0)
    h = jax.lax.conv_general_dilated(h, w2, (1, 1), 'SAME',
                                     dimension_numbers=dn) + b2
    return jnp.transpose(x + h, (0, 3, 1, 2))


# ---------------------------------- main ----------------------------------- #
if __name__ == "__main__":
    N, C, H, W = 2, 4, 16, 16

    key = jax.random.PRNGKey(0)
    k_x, k_w1, k_b1, k_w2, k_b2 = jax.random.split(key, 5)

    # Deterministic parameter init (PyTorch-like uniform fan-in scaling).
    fan_in = C * 3 * 3
    s = 1.0 / (fan_in ** 0.5)
    x = jax.random.normal(k_x, (N, C, H, W), dtype=jnp.float32)
    w1 = jax.random.uniform(k_w1, (3, 3, C, C), jnp.float32, -s, s)  # HWIO
    b1 = jax.random.uniform(k_b1, (C,), jnp.float32, -s, s)
    w2 = jax.random.uniform(k_w2, (3, 3, C, C), jnp.float32, -s, s)  # HWIO
    b2 = jax.random.uniform(k_b2, (C,), jnp.float32, -s, s)

    out = jax.block_until_ready(resblock_forward(x, w1, b1, w2, b2))
    ref = jax.block_until_ready(_resblock_ref(x, w1, b1, w2, b2))

    assert out.shape == (N, C, H, W)
    assert jnp.max(jnp.abs(out - ref)) < 1e-4

    print("KERNEL_OK")
</pallas_src>

<mosaic_0001>
module attributes {stable_mosaic.version = 11 : i64} {
  func.func @_resblock_kernel(%arg0: i32, %arg1: memref<2x4x256xf32, #tpu.memory_space<vmem>>, %arg2: memref<4x36xf32, #tpu.memory_space<vmem>>, %arg3: memref<4x1xf32, #tpu.memory_space<vmem>>, %arg4: memref<4x36xf32, #tpu.memory_space<vmem>>, %arg5: memref<4x1xf32, #tpu.memory_space<vmem>>, %arg6: memref<9x512xf32, #tpu.memory_space<vmem>>, %arg7: memref<2x4x256xf32, #tpu.memory_space<vmem>>, %arg8: memref<4x768xf32, #tpu.memory_space<vmem>>, %arg9: memref<36x512xf32, #tpu.memory_space<vmem>>) attributes {dimension_semantics = [#tpu.dimension_semantics<parallel>], iteration_bounds = array<i64: 1>, scalar_prefetch = 0 : i64, scratch_operands = 2 : i64, tpu.core_type = #tpu.core_type<tc>, window_params = [{transform_indices = @transform_0, window_bounds = array<i64: 2, 4, 256>}, {pipeline_mode = #tpu.pipeline_mode<synchronous>, transform_indices = @transform_1, window_bounds = array<i64: 4, 36>}, {pipeline_mode = #tpu.pipeline_mode<synchronous>, transform_indices = @transform_2, window_bounds = array<i64: 4, 1>}, {pipeline_mode = #tpu.pipeline_mode<synchronous>, transform_indices = @transform_3, window_bounds = array<i64: 4, 36>}, {pipeline_mode = #tpu.pipeline_mode<synchronous>, transform_indices = @transform_4, window_bounds = array<i64: 4, 1>}, {pipeline_mode = #tpu.pipeline_mode<synchronous>, transform_indices = @transform_5, window_bounds = array<i64: 9, 512>}, {transform_indices = @transform_6, window_bounds = array<i64: 2, 4, 256>}]} {
    %cst = arith.constant 0.000000e+00 : f32
    %0 = vector.broadcast %cst : f32 to vector<4x128xf32>
    %c0 = arith.constant 0 : index
    %c0_0 = arith.constant 0 : index
    %1 = vector.load %arg8[%c0, %c0_0] : memref<4x768xf32, #tpu.memory_space<vmem>>, vector<4x128xf32>
    tpu.vector_store %arg8[%c0, %c0_0], %0 {strides = array<i32>} : memref<4x768xf32, #tpu.memory_space<vmem>>, vector<4x128xf32>,
    %c0_1 = arith.constant 0 : index
    %c640 = arith.constant 640 : index
    %2 = vector.load %arg8[%c0_1, %c640] : memref<4x768xf32, #tpu.memory_space<vmem>>, vector<4x128xf32>
    tpu.vector_store %arg8[%c0_1, %c640], %0 {strides = array<i32>} : memref<4x768xf32, #tpu.memory_space<vmem>>, vector<4x128xf32>,
    %c0_2 = arith.constant 0 : index
    %c0_3 = arith.constant 0 : index
    %c0_4 = arith.constant 0 : index
    %3 = vector.load %arg1[%c0_2, %c0_3, %c0_4] : memref<2x4x256xf32, #tpu.memory_space<vmem>>, vector<1x4x256xf32>
    %4 = vector.shape_cast %3 : vector<1x4x256xf32> to vector<4x256xf32>
    %c0_5 = arith.constant 0 : index
    %c128 = arith.constant 128 : index
    %5 = vector.load %arg8[%c0_5, %c128] : memref<4x768xf32, #tpu.memory_space<vmem>>, vector<4x256xf32>
    tpu.vector_store %arg8[%c0_5, %c128], %4 {strides = array<i32>} : memref<4x768xf32, #tpu.memory_space<vmem>>, vector<4x256xf32>,
    %c1 = arith.constant 1 : index
    %c0_6 = arith.constant 0 : index
    %c0_7 = arith.constant 0 : index
    %6 = vector.load %arg1[%c1, %c0_6, %c0_7] : memref<2x4x256xf32, #tpu.memory_space<vmem>>, vector<1x4x256xf32>
    %7 = vector.shape_cast %6 : vector<1x4x256xf32> to vector<4x256xf32>
    %c0_8 = arith.constant 0 : index
    %c384 = arith.constant 384 : index
    %8 = vector.load %arg8[%c0_8, %c384] : memref<4x768xf32, #tpu.memory_space<vmem>>, vector<4x256xf32>
    tpu.vector_store %arg8[%c0_8, %c384], %7 {strides = array<i32>} : memref<4x768xf32, #tpu.memory_space<vmem>>, vector<4x256xf32>,
    %c0_9 = arith.constant 0 : index
    %c111 = arith.constant 111 : index
    %9 = vector.load %arg8[%c0_9, %c111] : memref<4x768xf32, #tpu.memory_space<vmem>>, vector<4x512xf32>
    %c0_10 = arith.constant 0 : index
    %c0_11 = arith.constant 0 : index
    %10 = vector.load %arg6[%c0_10, %c0_11] : memref<9x512xf32, #tpu.memory_space<vmem>>, vector<1x512xf32>
    %11 = vector.broadcast %10 : vector<1x512xf32> to vector<4x512xf32>
    %12 = arith.mulf %9, %11 : vector<4x512xf32>
    %c0_12 = arith.constant 0 : index
    %c0_13 = arith.constant 0 : index
    %13 = vector.load %arg9[%c0_12, %c0_13] : memref<36x512xf32, #tpu.memory_space<vmem>>, vector<4x512xf32>
    tpu.vector_store %arg9[%c0_12, %c0_13], %12 {strides = array<i32>} : memref<36x512xf32, #tpu.memory_space<vmem>>, vector<4x512xf32>,
    %c0_14 = arith.constant 0 : index
    %c112 = arith.constant 112 : index
    %14 = vector.load %arg8[%c0_14, %c112] : memref<4x768xf32, #tpu.memory_space<vmem>>, vector<4x512xf32>
    %c1_15 = arith.constant 1 : index
    %c0_16 = arith.constant 0 : index
    %15 = vector.load %arg6[%c1_15, %c0_16] : memref<9x512xf32, #tpu.memory_space<vmem>>, vector<1x512xf32>
    %16 = vector.broadcast %15 : vector<1x512xf32> to vector<4x512xf32>
    %17 = arith.mulf %14, %16 : vector<4x512xf32>
    %c4 = arith.constant 4 : index
    %c0_17 = arith.constant 0 : index
    %18 = vector.load %arg9[%c4, %c0_17] : memref<36x512xf32, #tpu.memory_space<vmem>>, vector<4x512xf32>
    tpu.vector_store %arg9[%c4, %c0_17], %17 {strides = array<i32>} : memref<36x512xf32, #tpu.memory_space<vmem>>, vector<4x512xf32>,
    %c0_18 = arith.constant 0 : index
    %c113 = arith.constant 113 : index
    %19 = vector.load %arg8[%c0_18, %c113] : memref<4x768xf32, #tpu.memory_space<vmem>>, vector<4x512xf32>
    %c2 = arith.constant 2 : index
    %c0_19 = arith.constant 0 : index
    %20 = vector.load %arg6[%c2, %c0_19] : memref<9x512xf32, #tpu.memory_space<vmem>>, vector<1x512xf32>
    %21 = vector.broadcast %20 : vector<1x512xf32> to vector<4x512xf32>
    %22 = arith.mulf %19, %21 : vector<4x512xf32>
    %c8 = arith.constant 8 : index
    %c0_20 = arith.constant 0 : index
    %23 = vector.load %arg9[%c8, %c0_20] : memref<36x512xf32, #tpu.memory_space<vmem>>, vector<4x512xf32>
    tpu.vector_store %arg9[%c8, %c0_20], %22 {strides = array<i32>} : memref<36x512xf32, #tpu.memory_space<vmem>>, vector<4x512xf32>,
    %c0_21 = arith.constant 0 : index
    %c127 = arith.constant 127 : index
    %24 = vector.load %arg8[%c0_21, %c127] : memref<4x768xf32, #tpu.memory_space<vmem>>, vector<4x512xf32>
    %c3 = arith.constant 3 : index
    %c0_22 = arith.constant 0 : index
    %25 = vector.load %arg6[%c3, %c0_22] : memref<9x512xf32, #tpu.memory_space<vmem>>, vector<1x512xf32>
    %26 = vector.broadcast %25 : vector<1x512xf32> to vector<4x512xf32>
    %27 = arith.mulf %24, %26 : vector<4x512xf32>
    %c12 = arith.constant 12 : index
    %c0_23 = arith.constant 0 : index
    %28 = vector.load %arg9[%c12, %c0_23] : memref<36x512xf32, #tpu.memory_space<vmem>>, vector<4x512xf32>
    tpu.vector_store %arg9[%c12, %c0_23], %27 {strides = array<i32>} : memref<36x512xf32, #tpu.memory_space<vmem>>, vector<4x512xf32>,
    %c0_24 = arith.constant 0 : index
    %c128_25 = arith.constant 128 : index
    %29 = vector.load %arg8[%c0_24, %c128_25] : memref<4x768xf32, #tpu.memory_space<vmem>>, vector<4x512xf32>
    %c16 = arith.constant 16 : index
    %c0_26 = arith.constant 0 : index
    %30 = vector.load %arg9[%c16, %c0_26] : memref<36x512xf32, #tpu.memory_space<vmem>>, vector<4x512xf32>
    tpu.vector_store %arg9[%c16, %c0_26], %29 {strides = array<i32>} : memref<36x512xf32, #tpu.memory_space<vmem>>, vector<4x512xf32>,
    %c0_27 = arith.constant 0 : index
    %c129 = arith.constant 129 : index
    %31 = vector.load %arg8[%c0_27, %c129] : memref<4x768xf32, #tpu.memory_space<vmem>>, vector<4x512xf32>
    %c5 = arith.constant 5 : index
    %c0_28 = arith.constant 0 : index
    %32 = vector.load %arg6[%c5, %c0_28] : memref<9x512xf32, #tpu.memory_space<vmem>>, vector<1x512xf32>
    %33 = vector.broadcast %32 : vector<1x512xf32> to vector<4x512xf32>
    %34 = arith.mulf %31, %33 : vector<4x512xf32>
    %c20 = arith.constant 20 : index
    %c0_29 = arith.constant 0 : index
    %35 = vector.load %arg9[%c20, %c0_29] : memref<36x512xf32, #tpu.memory_space<vmem>>, vector<4x512xf32>
    tpu.vector_store %arg9[%c20, %c0_29], %34 {strides = array<i32>} : memref<36x512xf32, #tpu.memory_space<vmem>>, vector<4x512xf32>,
    %c0_30 = arith.constant 0 : index
    %c143 = arith.constant 143 : index
    %36 = vector.load %arg8[%c0_30, %c143] : memref<4x768xf32, #tpu.memory_space<vmem>>, vector<4x512xf32>
    %c6 = arith.constant 6 : index
    %c0_31 = arith.constant 0 : index
    %37 = vector.load %arg6[%c6, %c0_31] : memref<9x512xf32, #tpu.memory_space<vmem>>, vector<1x512xf32>
    %38 = vector.broadcast %37 : vector<1x512xf32> to vector<4x512xf32>
    %39 = arith.mulf %36, %38 : vector<4x512xf32>
    %c24 = arith.constant 24 : index
    %c0_32 = arith.constant 0 : index
    %40 = vector.load %arg9[%c24, %c0_32] : memref<36x512xf32, #tpu.memory_space<vmem>>, vector<4x512xf32>
    tpu.vector_store %arg9[%c24, %c0_32], %39 {strides = array<i32>} : memref<36x512xf32, #tpu.memory_space<vmem>>, vector<4x512xf32>,
    %c0_33 = arith.constant 0 : index
    %c144 = arith.constant 144 : index
    %41 = vector.load %arg8[%c0_33, %c144] : memref<4x768xf32, #tpu.memory_space<vmem>>, vector<4x512xf32>
    %c7 = arith.constant 7 : index
    %c0_34 = arith.constant 0 : index
    %42 = vector.load %arg6[%c7, %c0_34] : memref<9x512xf32, #tpu.memory_space<vmem>>, vector<1x512xf32>
    %43 = vector.broadcast %42 : vector<1x512xf32> to vector<4x512xf32>
    %44 = arith.mulf %41, %43 : vector<4x512xf32>
    %c28 = arith.constant 28 : index
    %c0_35 = arith.constant 0 : index
    %45 = vector.load %arg9[%c28, %c0_35] : memref<36x512xf32, #tpu.memory_space<vmem>>, vector<4x512xf32>
    tpu.vector_store %arg9[%c28, %c0_35], %44 {strides = array<i32>} : memref<36x512xf32, #tpu.memory_space<vmem>>, vector<4x512xf32>,
    %c0_36 = arith.constant 0 : index
    %c145 = arith.constant 145 : index
    %46 = vector.load %arg8[%c0_36, %c145] : memref<4x768xf32, #tpu.memory_space<vmem>>, vector<4x512xf32>
    %c8_37 = arith.constant 8 : index
    %c0_38 = arith.constant 0 : index
    %47 = vector.load %arg6[%c8_37, %c0_38] : memref<9x512xf32, #tpu.memory_space<vmem>>, vector<1x512xf32>
    %48 = vector.broadcast %47 : vector<1x512xf32> to vector<4x512xf32>
    %49 = arith.mulf %46, %48 : vector<4x512xf32>
    %c32 = arith.constant 32 : index
    %c0_39 = arith.constant 0 : index
    %50 = vector.load %arg9[%c32, %c0_39] : memref<36x512xf32, #tpu.memory_space<vmem>>, vector<4x512xf32>
    tpu.vector_store %arg9[%c32, %c0_39], %49 {strides = array<i32>} : memref<36x512xf32, #tpu.memory_space<vmem>>, vector<4x512xf32>,
    %c0_40 = arith.constant 0 : index
    %c0_41 = arith.constant 0 : index
    %51 = vector.load %arg2[%c0_40, %c0_41] : memref<4x36xf32, #tpu.memory_space<vmem>>, vector<4x36xf32>
    %c0_42 = arith.constant 0 : index
    %c0_43 = arith.constant 0 : index
    %52 = vector.load %arg9[%c0_42, %c0_43] : memref<36x512xf32, #tpu.memory_space<vmem>>, vector<36x512xf32>
    %cst_44 = arith.constant dense<0.000000e+00> : vector<4x512xf32>
    %53 = tpu.matmul %51, %52, %cst_44 {dimension_numbers = #tpu.dot_dimension_numbers<[1], [0], [0], [1], [0, 0, 1, 1], [], []>} : vector<4x36xf32>, vector<36x512xf32>, vector<4x512xf32> -> vector<4x512xf32>
    %c0_45 = arith.constant 0 : index
    %c0_46 = arith.constant 0 : index
    %54 = vector.load %arg3[%c0_45, %c0_46] : memref<4x1xf32, #tpu.memory_space<vmem>>, vector<4x1xf32>
    %55 = vector.broadcast %54 : vector<4x1xf32> to vector<4x512xf32>
    %56 = arith.addf %53, %55 : vector<4x512xf32>
    %cst_47 = arith.constant 0.000000e+00 : f32
    %57 = vector.broadcast %cst_47 : f32 to vector<4x512xf32>
    %58 = arith.maximumf %56, %57 : vector<4x512xf32>
    %c0_48 = arith.constant 0 : index
    %c128_49 = arith.constant 128 : index
    %59 = vector.load %arg8[%c0_48, %c128_49] : memref<4x768xf32, #tpu.memory_space<vmem>>, vector<4x512xf32>
    tpu.vector_store %arg8[%c0_48, %c128_49], %58 {strides = array<i32>} : memref<4x768xf32, #tpu.memory_space<vmem>>, vector<4x512xf32>,
    %c0_50 = arith.constant 0 : index
    %c111_51 = arith.constant 111 : index
    %60 = vector.load %arg8[%c0_50, %c111_51] : memref<4x768xf32, #tpu.memory_space<vmem>>, vector<4x512xf32>
    %c0_52 = arith.constant 0 : index
    %c0_53 = arith.constant 0 : index
    %61 = vector.load %arg6[%c0_52, %c0_53] : memref<9x512xf32, #tpu.memory_space<vmem>>, vector<1x512xf32>
    %62 = vector.broadcast %61 : vector<1x512xf32> to vector<4x512xf32>
    %63 = arith.mulf %60, %62 : vector<4x512xf32>
    %c0_54 = arith.constant 0 : index
    %c0_55 = arith.constant 0 : index
    %64 = vector.load %arg9[%c0_54, %c0_55] : memref<36x512xf32, #tpu.memory_space<vmem>>, vector<4x512xf32>
    tpu.vector_store %arg9[%c0_54, %c0_55], %63 {strides = array<i32>} : memref<36x512xf32, #tpu.memory_space<vmem>>, vector<4x512xf32>,
    %c0_56 = arith.constant 0 : index
    %c112_57 = arith.constant 112 : index
    %65 = vector.load %arg8[%c0_56, %c112_57] : memref<4x768xf32, #tpu.memory_space<vmem>>, vector<4x512xf32>
    %c1_58 = arith.constant 1 : index
    %c0_59 = arith.constant 0 : index
    %66 = vector.load %arg6[%c1_58, %c0_59] : memref<9x512xf32, #tpu.memory_space<vmem>>, vector<1x512xf32>
    %67 = vector.broadcast %66 : vector<1x512xf32> to vector<4x512xf32>
    %68 = arith.mulf %65, %67 : vector<4x512xf32>
    %c4_60 = arith.constant 4 : index
    %c0_61 = arith.constant 0 : index
    %69 = vector.load %arg9[%c4_60, %c0_61] : memref<36x512xf32, #tpu.memory_space<vmem>>, vector<4x512xf32>
    tpu.vector_store %arg9[%c4_60, %c0_61], %68 {strides = array<i32>} : memref<36x512xf32, #tpu.memory_space<vmem>>, vector<4x512xf32>,
    %c0_62 = arith.constant 0 : index
    %c113_63 = arith.constant 113 : index
    %70 = vector.load %arg8[%c0_62, %c113_63] : memref<4x768xf32, #tpu.memory_space<vmem>>, vector<4x512xf32>
    %c2_64 = arith.constant 2 : index
    %c0_65 = arith.constant 0 : index
    %71 = vector.load %arg6[%c2_64, %c0_65] : memref<9x512xf32, #tpu.memory_space<vmem>>, vector<1x512xf32>
    %72 = vector.broadcast %71 : vector<1x512xf32> to vector<4x512xf32>
    %73 = arith.mulf %70, %72 : vector<4x512xf32>
    %c8_66 = arith.constant 8 : index
    %c0_67 = arith.constant 0 : index
    %74 = vector.load %arg9[%c8_66, %c0_67] : memref<36x512xf32, #tpu.memory_space<vmem>>, vector<4x512xf32>
    tpu.vector_store %arg9[%c8_66, %c0_67], %73 {strides = array<i32>} : memref<36x512xf32, #tpu.memory_space<vmem>>, vector<4x512xf32>,
    %c0_68 = arith.constant 0 : index
    %c127_69 = arith.constant 127 : index
    %75 = vector.load %arg8[%c0_68, %c127_69] : memref<4x768xf32, #tpu.memory_space<vmem>>, vector<4x512xf32>
    %c3_70 = arith.constant 3 : index
    %c0_71 = arith.constant 0 : index
    %76 = vector.load %arg6[%c3_70, %c0_71] : memref<9x512xf32, #tpu.memory_space<vmem>>, vector<1x512xf32>
    %77 = vector.broadcast %76 : vector<1x512xf32> to vector<4x512xf32>
    %78 = arith.mulf %75, %77 : vector<4x512xf32>
    %c12_72 = arith.constant 12 : index
    %c0_73 = arith.constant 0 : index
    %79 = vector.load %arg9[%c12_72, %c0_73] : memref<36x512xf32, #tpu.memory_space<vmem>>, vector<4x512xf32>
    tpu.vector_store %arg9[%c12_72, %c0_73], %78 {strides = array<i32>} : memref<36x512xf32, #tpu.memory_space<vmem>>, vector<4x512xf32>,
    %c0_74 = arith.constant 0 : index
    %c128_75 = arith.constant 128 : index
    %80 = vector.load %arg8[%c0_74, %c128_75] : memref<4x768xf32, #tpu.memory_space<vmem>>, vector<4x512xf32>
    %c16_76 = arith.constant 16 : index
    %c0_77 = arith.constant 0 : index
    %81 = vector.load %arg9[%c16_76, %c0_77] : memref<36x512xf32, #tpu.memory_space<vmem>>, vector<4x512xf32>
    tpu.vector_store %arg9[%c16_76, %c0_77], %80 {strides = array<i32>} : memref<36x512xf32, #tpu.memory_space<vmem>>, vector<4x512xf32>,
    %c0_78 = arith.constant 0 : index
    %c129_79 = arith.constant 129 : index
    %82 = vector.load %arg8[%c0_78, %c129_79] : memref<4x768xf32, #tpu.memory_space<vmem>>, vector<4x512xf32>
    %c5_80 = arith.constant 5 : index
    %c0_81 = arith.constant 0 : index
    %83 = vector.load %arg6[%c5_80, %c0_81] : memref<9x512xf32, #tpu.memory_space<vmem>>, vector<1x512xf32>
    %84 = vector.broadcast %83 : vector<1x512xf32> to vector<4x512xf32>
    %85 = arith.mulf %82, %84 : vector<4x512xf32>
    %c20_82 = arith.constant 20 : index
    %c0_83 = arith.constant 0 : index
    %86 = vector.load %arg9[%c20_82, %c0_83] : memref<36x512xf32, #tpu.memory_space<vmem>>, vector<4x512xf32>
    tpu.vector_store %arg9[%c20_82, %c0_83], %85 {strides = array<i32>} : memref<36x512xf32, #tpu.memory_space<vmem>>, vector<4x512xf32>,
    %c0_84 = arith.constant 0 : index
    %c143_85 = arith.constant 143 : index
    %87 = vector.load %arg8[%c0_84, %c143_85] : memref<4x768xf32, #tpu.memory_space<vmem>>, vector<4x512xf32>
    %c6_86 = arith.constant 6 : index
    %c0_87 = arith.constant 0 : index
    %88 = vector.load %arg6[%c6_86, %c0_87] : memref<9x512xf32, #tpu.memory_space<vmem>>, vector<1x512xf32>
    %89 = vector.broadcast %88 : vector<1x512xf32> to vector<4x512xf32>
    %90 = arith.mulf %87, %89 : vector<4x512xf32>
    %c24_88 = arith.constant 24 : index
    %c0_89 = arith.constant 0 : index
    %91 = vector.load %arg9[%c24_88, %c0_89] : memref<36x512xf32, #tpu.memory_space<vmem>>, vector<4x512xf32>
    tpu.vector_store %arg9[%c24_88, %c0_89], %90 {strides = array<i32>} : memref<36x512xf32, #tpu.memory_space<vmem>>, vector<4x512xf32>,
    %c0_90 = arith.constant 0 : index
    %c144_91 = arith.constant 144 : index
    %92 = vector.load %arg8[%c0_90, %c144_91] : memref<4x768xf32, #tpu.memory_space<vmem>>, vector<4x512xf32>
    %c7_92 = arith.constant 7 : index
    %c0_93 = arith.constant 0 : index
    %93 = vector.load %arg6[%c7_92, %c0_93] : memref<9x512xf32, #tpu.memory_space<vmem>>, vector<1x512xf32>
    %94 = vector.broadcast %93 : vector<1x512xf32> to vector<4x512xf32>
    %95 = arith.mulf %92, %94 : vector<4x512xf32>
    %c28_94 = arith.constant 28 : index
    %c0_95 = arith.constant 0 : index
    %96 = vector.load %arg9[%c28_94, %c0_95] : memref<36x512xf32, #tpu.memory_space<vmem>>, vector<4x512xf32>
    tpu.vector_store %arg9[%c28_94, %c0_95], %95 {strides = array<i32>} : memref<36x512xf32, #tpu.memory_space<vmem>>, vector<4x512xf32>,
    %c0_96 = arith.constant 0 : index
    %c145_97 = arith.constant 145 : index
    %97 = vector.load %arg8[%c0_96, %c145_97] : memref<4x768xf32, #tpu.memory_space<vmem>>, vector<4x512xf32>
    %c8_98 = arith.constant 8 : index
    %c0_99 = arith.constant 0 : index
    %98 = vector.load %arg6[%c8_98, %c0_99] : memref<9x512xf32, #tpu.memory_space<vmem>>, vector<1x512xf32>
    %99 = vector.broadcast %98 : vector<1x512xf32> to vector<4x512xf32>
    %100 = arith.mulf %97, %99 : vector<4x512xf32>
    %c32_100 = arith.constant 32 : index
    %c0_101 = arith.constant 0 : index
    %101 = vector.load %arg9[%c32_100, %c0_101] : memref<36x512xf32, #tpu.memory_space<vmem>>, vector<4x512xf32>
    tpu.vector_store %arg9[%c32_100, %c0_101], %100 {strides = array<i32>} : memref<36x512xf32, #tpu.memory_space<vmem>>, vector<4x512xf32>,
    %c0_102 = arith.constant 0 : index
    %c0_103 = arith.constant 0 : index
    %102 = vector.load %arg4[%c0_102, %c0_103] : memref<4x36xf32, #tpu.memory_space<vmem>>, vector<4x36xf32>
    %c0_104 = arith.constant 0 : index
    %c0_105 = arith.constant 0 : index
    %103 = vector.load %arg9[%c0_104, %c0_105] : memref<36x512xf32, #tpu.memory_space<vmem>>, vector<36x512xf32>
    %cst_106 = arith.constant dense<0.000000e+00> : vector<4x512xf32>
    %104 = tpu.matmul %102, %103, %cst_106 {dimension_numbers = #tpu.dot_dimension_numbers<[1], [0], [0], [1], [0, 0, 1, 1], [], []>} : vector<4x36xf32>, vector<36x512xf32>, vector<4x512xf32> -> vector<4x512xf32>
    %c0_107 = arith.constant 0 : index
    %c0_108 = arith.constant 0 : index
    %105 = vector.load %arg5[%c0_107, %c0_108] : memref<4x1xf32, #tpu.memory_space<vmem>>, vector<4x1xf32>
    %106 = vector.broadcast %105 : vector<4x1xf32> to vector<4x512xf32>
    %107 = arith.addf %104, %106 : vector<4x512xf32>
    %108 = vector.extract_strided_slice %107 {offsets = [0, 0], sizes = [4, 256], strides = [1, 1]} : vector<4x512xf32> to vector<4x256xf32>
    %c0_109 = arith.constant 0 : index
    %c0_110 = arith.constant 0 : index
    %c0_111 = arith.constant 0 : index
    %109 = vector.load %arg1[%c0_109, %c0_110, %c0_111] : memref<2x4x256xf32, #tpu.memory_space<vmem>>, vector<1x4x256xf32>
    %110 = vector.shape_cast %109 : vector<1x4x256xf32> to vector<4x256xf32>
    %111 = arith.addf %108, %110 : vector<4x256xf32>
    %c0_112 = arith.constant 0 : index
    %c0_113 = arith.constant 0 : index
    %c0_114 = arith.constant 0 : index
    %112 = vector.load %arg7[%c0_112, %c0_113, %c0_114] : memref<2x4x256xf32, #tpu.memory_space<vmem>>, vector<1x4x256xf32>
    %113 = vector.shape_cast %112 : vector<1x4x256xf32> to vector<4x256xf32>
    %114 = vector.shape_cast %111 : vector<4x256xf32> to vector<1x4x256xf32>
    tpu.vector_store %arg7[%c0_112, %c0_113, %c0_114], %114 {strides = array<i32>} : memref<2x4x256xf32, #tpu.memory_space<vmem>>, vector<1x4x256xf32>,
    %115 = vector.extract_strided_slice %107 {offsets = [0, 256], sizes = [4, 256], strides = [1, 1]} : vector<4x512xf32> to vector<4x256xf32>
    %c1_115 = arith.constant 1 : index
    %c0_116 = arith.constant 0 : index
    %c0_117 = arith.constant 0 : index
    %116 = vector.load %arg1[%c1_115, %c0_116, %c0_117] : memref<2x4x256xf32, #tpu.memory_space<vmem>>, vector<1x4x256xf32>
    %117 = vector.shape_cast %116 : vector<1x4x256xf32> to vector<4x256xf32>
    %118 = arith.addf %115, %117 : vector<4x256xf32>
    %c1_118 = arith.constant 1 : index
    %c0_119 = arith.constant 0 : index
    %c0_120 = arith.constant 0 : index
    %119 = vector.load %arg7[%c1_118, %c0_119, %c0_120] : memref<2x4x256xf32, #tpu.memory_space<vmem>>, vector<1x4x256xf32>
    %120 = vector.shape_cast %119 : vector<1x4x256xf32> to vector<4x256xf32>
    %121 = vector.shape_cast %118 : vector<4x256xf32> to vector<1x4x256xf32>
    tpu.vector_store %arg7[%c1_118, %c0_119, %c0_120], %121 {strides = array<i32>} : memref<2x4x256xf32, #tpu.memory_space<vmem>>, vector<1x4x256xf32>,
    return
  }
  func.func @transform_0(%arg0: i32) -> (i32, i32, i32) {
    %c0_i32 = arith.constant 0 : i32
    %c0_i32_0 = arith.constant 0 : i32
    %c0_i32_1 = arith.constant 0 : i32
    return %arg0, %c0_i32, %c0_i32_0 : i32, i32, i32
  }
  func.func @transform_1(%arg0: i32) -> (i32, i32) {
    %c0_i32 = arith.constant 0 : i32
    %c0_i32_0 = arith.constant 0 : i32
    %c0_i32_1 = arith.constant 0 : i32
    return %c0_i32, %c0_i32_0 : i32, i32
  }
  func.func @transform_2(%arg0: i32) -> (i32, i32) {
    %c0_i32 = arith.constant 0 : i32
    %c0_i32_0 = arith.constant 0 : i32
    %c0_i32_1 = arith.constant 0 : i32
    return %c0_i32, %c0_i32_0 : i32, i32
  }
  func.func @transform_3(%arg0: i32) -> (i32, i32) {
    %c0_i32 = arith.constant 0 : i32
    %c0_i32_0 = arith.constant 0 : i32
    %c0_i32_1 = arith.constant 0 : i32
    return %c0_i32, %c0_i32_0 : i32, i32
  }
  func.func @transform_4(%arg0: i32) -> (i32, i32) {
    %c0_i32 = arith.constant 0 : i32
    %c0_i32_0 = arith.constant 0 : i32
    %c0_i32_1 = arith.constant 0 : i32
    return %c0_i32, %c0_i32_0 : i32, i32
  }
  func.func @transform_5(%arg0: i32) -> (i32, i32) {
    %c0_i32 = arith.constant 0 : i32
    %c0_i32_0 = arith.constant 0 : i32
    %c0_i32_1 = arith.constant 0 : i32
    return %c0_i32, %c0_i32_0 : i32, i32
  }
  func.func @transform_6(%arg0: i32) -> (i32, i32, i32) {
    %c0_i32 = arith.constant 0 : i32
    %c0_i32_0 = arith.constant 0 : i32
    %c0_i32_1 = arith.constant 0 : i32
    return %arg0, %c0_i32, %c0_i32_0 : i32, i32, i32
  }
}

</mosaic_0001>

<llo_original>
// kernel: tpu_custom_call.1
$region0: #{tpu_custom_call.1}
  #allocation0 [shape = 'u32[]', space=smem, size = 0x4, offset = 0x4, fixed_abs, tag = 'smem constant byte address 0x4 - core index']
  #allocation1 [shape = 'u32[144,128]{1,0:T(1,128)}', space=vmem, size = 0x12000, scoped, tag = 'internal scratch']
  #allocation2 [shape = 'f32[4,768]{1,0:T(4,128)}', space=vmem, size = 0x3000, scoped, tag = 'scratch operand']
  #allocation3 [shape = 'f32[36,512]{1,0:T(8,128)}', space=vmem, size = 0x14000, scoped, tag = 'scratch operand']
  %s0 = inlined_call_operand.hbm [shape: f32[2,4,256], index: 0, kind: input, shape index: {}]
  %s1 = inlined_call_operand.vmem [shape: f32[4,36], index: 1, kind: input, shape index: {}]
  %s2 = inlined_call_operand.vmem [shape: f32[4,1], index: 2, kind: input, shape index: {}]
  %s3 = inlined_call_operand.vmem [shape: f32[4,36], index: 3, kind: input, shape index: {}]
  %s4 = inlined_call_operand.vmem [shape: f32[4,1], index: 4, kind: input, shape index: {}]
  %s5 = inlined_call_operand.hbm [shape: f32[9,512], index: 5, kind: input, shape index: {}]
  %s6 = inlined_call_operand.hbm [shape: f32[2,4,256], index: 6, kind: output, shape index: {}]
  %s7 = sld [smem:[#allocation0]]
  $region42: #{tpu_custom_call.1} parent=0
    _
  %s9 = ssub.s32 1, %s7
  %s10 = scalar_select 0, %s9, %s7
  $region1: #{tpu_custom_call.1} parent=0
    #allocation4 [shape = 'u8[8192]{0}', space=vmem, size = 0x2000, scoped, tag = 'input window, operand 0, single buffered']
    #allocation5 [shape = 's32[1]{0}', space=sflag, size = 0x4, scoped, tag = 'scoped memory for tpu_custom_call.1']
    #allocation6 [shape = 's32[1]{0}', space=sflag, size = 0x4, scoped, tag = 'scoped memory for tpu_custom_call.1']
    #allocation7 [shape = 'u8[32768]{0}', space=vmem, size = 0x8000, scoped, tag = 'input window, operand 5, single buffered']
    #allocation8 [shape = 's32[1]{0}', space=sflag, size = 0x4, scoped, tag = 'scoped memory for tpu_custom_call.1']
    #allocation9 [shape = 'u8[8192]{0}', space=vmem, size = 0x2000, scoped, tag = 'output window, operand 0, single buffered']
    %11 = vsyncpa [#allocation5], 0
    %12 = vsyncpa [#allocation8], 0
    %13 = vsyncpa [#allocation6], 0
    // Predicated region
    $region2: #{tpu_custom_call.1} parent=1 // pred_check
      _
    $region3: #{tpu_custom_call.1} parent=1 // pred_check_branch
      %15 = sbr.rel (0) target = $region5
    $region4: #{tpu_custom_call.1} parent=1 // pred_region
      %s17 = ssub.s32 256, 256
      %18 = vsyncadd [#allocation5], %s17
      %s19 = sshll.u32 [#allocation4], 4
      %s20 = int_to_ptr.vmem [resolvable:$true] %s19
      %25 = dma.hbm_to_vmem [thread:$0]  %s0, 256, %s20, [#allocation5], 128, 128, 8
    $region5: #{tpu_custom_call.1} parent=1 // pred_fallthru
      _
    // Predicated region
    $region6: #{tpu_custom_call.1} parent=1 // pred_check
      _
    $region7: #{tpu_custom_call.1} parent=1 // pred_check_branch
      %27 = sbr.rel (0) target = $region9
    $region8: #{tpu_custom_call.1} parent=1 // pred_region
      _
    $region9: #{tpu_custom_call.1} parent=1 // pred_fallthru
      _
    // Predicated region
    $region10: #{tpu_custom_call.1} parent=1 // pred_check
      _
    $region11: #{tpu_custom_call.1} parent=1 // pred_check_branch
      %29 = sbr.rel (0) target = $region13
    $region12: #{tpu_custom_call.1} parent=1 // pred_region
      _
    $region13: #{tpu_custom_call.1} parent=1 // pred_fallthru
      _
    // Predicated region
    $region14: #{tpu_custom_call.1} parent=1 // pred_check
      _
    $region15: #{tpu_custom_call.1} parent=1 // pred_check_branch
      %31 = sbr.rel (0) target = $region17
    $region16: #{tpu_custom_call.1} parent=1 // pred_region
      _
    $region17: #{tpu_custom_call.1} parent=1 // pred_fallthru
      _
    // Predicated region
    $region18: #{tpu_custom_call.1} parent=1 // pred_check
      _
    $region19: #{tpu_custom_call.1} parent=1 // pred_check_branch
      %33 = sbr.rel (0) target = $region21
    $region20: #{tpu_custom_call.1} parent=1 // pred_region
      _
    $region21: #{tpu_custom_call.1} parent=1 // pred_fallthru
      _
    // Predicated region
    $region22: #{tpu_custom_call.1} parent=1 // pred_check
      _
    $region23: #{tpu_custom_call.1} parent=1 // pred_check_branch
      %35 = sbr.rel (0) target = $region25
    $region24: #{tpu_custom_call.1} parent=1 // pred_region
      %s37 = ssub.s32 1024, 1024
      %38 = vsyncadd [#allocation8], %s37
      %s39 = sshll.u32 [#allocation7], 4
      %s40 = int_to_ptr.vmem [resolvable:$true] %s39
      %45 = dma.hbm_to_vmem [thread:$0]  %s5, 1024, %s40, [#allocation8], 512, 512, 32
    $region25: #{tpu_custom_call.1} parent=1 // pred_fallthru
      _
    // Predicated region
    $region26: #{tpu_custom_call.1} parent=1 // pred_check
      _
    $region27: #{tpu_custom_call.1} parent=1 // pred_check_branch
      %47 = sbr.rel (0) target = $region29
    $region28: #{tpu_custom_call.1} parent=1 // pred_region
      %48 = dma.done [#allocation5], 256
    $region29: #{tpu_custom_call.1} parent=1 // pred_fallthru
      _
    // Predicated region
    $region30: #{tpu_custom_call.1} parent=1 // pred_check
      _
    $region31: #{tpu_custom_call.1} parent=1 // pred_check_branch
      %50 = sbr.rel (0) target = $region33
    $region32: #{tpu_custom_call.1} parent=1 // pred_region
      %51 = dma.done [#allocation8], 1024
    $region33: #{tpu_custom_call.1} parent=1 // pred_fallthru
      _
    %52 = vst [vmem:[#allocation2] sm:$0xf] 0.0
    %53 = vst [vmem:[#allocation2 + $0x14] sm:$0xf] 0.0
    %v54 = vld [vmem:[#allocation4] sm:$0xff]
    %55 = vst [vmem:[#allocation2 + $0x4] sm:$0xff] %v54
    %s56 = scalar_lea.vmem [#allocation4], 8
    %v57 = vld [vmem:[%s56] sm:$0xff]
    %58 = vst [vmem:[#allocation2 + $0xc] sm:$0xff] %v57
    %v59 = vld [vmem:[#allocation2] sm:$0xff]
    %v60 = vld [vmem:[#allocation2 + $0x8] sm:$0xff]
    %v61 = vld [vmem:[#allocation2 + $0x10] sm:$0xf]
    %v62 = vld [vmem:[#allocation7] ss:$8 sm:$0xf]
    %v64 = vlaneseq
    %v65 = vshrl.u32 %v64, 7
    %v66 = vsub.s32 0, %v65
    %v67 = vrot.slane %v62, %v66
    %v68 = vlaneseq
    %v69 = vshrl.u32 %v68, 7
    %v70 = vsub.s32 1, %v69
    %v71 = vrot.slane %v62, %v70
    %v72 = vlaneseq
    %v73 = vshrl.u32 %v72, 7
    %v74 = vsub.s32 2, %v73
    %v75 = vrot.slane %v62, %v74
    %v76 = vlaneseq
    %v77 = vshrl.u32 %v76, 7
    %v78 = vsub.s32 3, %v77
    %v79 = vrot.slane %v62, %v78
    %v80 = vcombine.low %v67, %v71
    %v81 = vcombine.low %v75, %v79
    %82 = vrot.lane.b32.xlu0 %v80, 111
    %v83 = vpop.permute.xlu0 %82
    %84 = vrot.lane.b32.xlu0 %v81, 111
    %v85 = vpop.permute.xlu0 %84
    %v86 = vrot.slane %v83, 4
    %v87 = vrot.slane %v85, 4
    %vm88 = vcmask 908288
    %v89 = vsel %vm88, %v86, %v83
    %vm90 = vcmask 1043456
    %v91 = vsel %vm90, %v86, %v87
    %v92 = vsel %vm88, %v91, %v85
    %v96 = vmul.f32 %v59, %v89
    %v97 = vmul.f32 %v60, %v92
    %v98 = vmul.f32 %v61, %v87
    %v102 = vcombine.high %v96, %v96
    %v103 = vcombine.high %v97, %v97
    %104 = vrot.lane.b32.xlu0 %v96, 17
    %v105 = vpop.permute.xlu0 %104
    %106 = vrot.lane.b32.xlu0 %v102, 17
    %v107 = vpop.permute.xlu0 %106
    %108 = vrot.lane.b32.xlu0 %v97, 17
    %v109 = vpop.permute.xlu0 %108
    %110 = vrot.lane.b32.xlu0 %v103, 17
    %v111 = vpop.permute.xlu0 %110
    %112 = vrot.lane.b32.xlu0 %v98, 17
    %v113 = vpop.permute.xlu0 %112
    %vm114 = vcmask 138240
    %v115 = vsel %vm114, %v105, %v107
    %v116 = vsel %vm114, %v107, %v109
    %v117 = vsel %vm114, %v109, %v111
    %v118 = vsel %vm114, %v111, %v113
    %123 = vst [vmem:[#allocation3] sm:$0xf] %v115
    %124 = vst [vmem:[#allocation3 + $0x8] sm:$0xf] %v116
    %125 = vst [vmem:[#allocation3 + $0x10] sm:$0xf] %v117
    %126 = vst [vmem:[#allocation3 + $0x18] sm:$0xf] %v118
    %v127 = vld [vmem:[#allocation2] sm:$0xff]
    %v128 = vld [vmem:[#allocation2 + $0x8] sm:$0xff]
    %v129 = vld [vmem:[#allocation2 + $0x10] sm:$0xf]
    %s130 = scalar_lea.vmem [#allocation7], 1
    %v131 = vld [vmem:[%s130] ss:$8 sm:$0xf]
    %v133 = vlaneseq
    %v134 = vshrl.u32 %v133, 7
    %v135 = vsub.s32 0, %v134
    %v136 = vrot.slane %v131, %v135
    %v137 = vlaneseq
    %v138 = vshrl.u32 %v137, 7
    %v139 = vsub.s32 1, %v138
    %v140 = vrot.slane %v131, %v139
    %v141 = vlaneseq
    %v142 = vshrl.u32 %v141, 7
    %v143 = vsub.s32 2, %v142
    %v144 = vrot.slane %v131, %v143
    %v145 = vlaneseq
    %v146 = vshrl.u32 %v145, 7
    %v147 = vsub.s32 3, %v146
    %v148 = vrot.slane %v131, %v147
    %v149 = vcombine.low %v136, %v140
    %v150 = vcombine.low %v144, %v148
    %151 = vrot.lane.b32.xlu0 %v149, 112
    %v152 = vpop.permute.xlu0 %151
    %153 = vrot.lane.b32.xlu0 %v150, 112
    %v154 = vpop.permute.xlu0 %153
    %v155 = vrot.slane %v152, 4
    %v156 = vrot.slane %v154, 4
    %vm157 = vcmask 916480
    %v158 = vsel %vm157, %v155, %v152
    %v159 = vsel %vm90, %v155, %v156
    %v160 = vsel %vm157, %v159, %v154
    %v164 = vmul.f32 %v127, %v158
    %v165 = vmul.f32 %v128, %v160
    %v166 = vmul.f32 %v129, %v156
    %v170 = vcombine.low %v164, %v164
    %v171 = vcombine.low %v165, %v165
    %v172 = vcombine.low %v166, %v166
    %173 = vrot.lane.b32.xlu0 %v170, 16
    %v174 = vpop.permute.xlu0 %173
    %175 = vrot.lane.b32.xlu0 %v164, 16
    %v176 = vpop.permute.xlu0 %175
    %177 = vrot.lane.b32.xlu0 %v171, 16
    %v178 = vpop.permute.xlu0 %177
    %179 = vrot.lane.b32.xlu0 %v165, 16
    %v180 = vpop.permute.xlu0 %179
    %181 = vrot.lane.b32.xlu0 %v172, 16
    %v182 = vpop.permute.xlu0 %181
    %vm183 = vcmask 130048
    %v184 = vsel %vm183, %v174, %v176
    %v185 = vsel %vm183, %v176, %v178
    %v186 = vsel %vm183, %v178, %v180
    %v187 = vsel %vm183, %v180, %v182
    %192 = vst [vmem:[#allocation3] sm:$0xf0] %v184
    %193 = vst [vmem:[#allocation3 + $0x8] sm:$0xf0] %v185
    %194 = vst [vmem:[#allocation3 + $0x10] sm:$0xf0] %v186
    %195 = vst [vmem:[#allocation3 + $0x18] sm:$0xf0] %v187
    %v196 = vld [vmem:[#allocation2] sm:$0xff]
    %v197 = vld [vmem:[#allocation2 + $0x8] sm:$0xff]
    %v198 = vld [vmem:[#allocation2 + $0x10] sm:$0xf]
    %s199 = scalar_lea.vmem [#allocation7], 2
    %v200 = vld [vmem:[%s199] ss:$8 sm:$0xf]
    %v202 = vlaneseq
    %v203 = vshrl.u32 %v202, 7
    %v204 = vsub.s32 0, %v203
    %v205 = vrot.slane %v200, %v204
    %v206 = vlaneseq
    %v207 = vshrl.u32 %v206, 7
    %v208 = vsub.s32 1, %v207
    %v209 = vrot.slane %v200, %v208
    %v210 = vlaneseq
    %v211 = vshrl.u32 %v210, 7
    %v212 = vsub.s32 2, %v211
    %v213 = vrot.slane %v200, %v212
    %v214 = vlaneseq
    %v215 = vshrl.u32 %v214, 7
    %v216 = vsub.s32 3, %v215
    %v217 = vrot.slane %v200, %v216
    %v218 = vcombine.low %v205, %v209
    %v219 = vcombine.low %v213, %v217
    %220 = vrot.lane.b32.xlu0 %v218, 113
    %v221 = vpop.permute.xlu0 %220
    %222 = vrot.lane.b32.xlu0 %v219, 113
    %v223 = vpop.permute.xlu0 %222
    %v224 = vrot.slane %v221, 4
    %v225 = vrot.slane %v223, 4
    %vm226 = vcmask 924672
    %v227 = vsel %vm226, %v224, %v221
    %v228 = vsel %vm90, %v224, %v225
    %v229 = vsel %vm226, %v228, %v223
    %v233 = vmul.f32 %v196, %v227
    %v234 = vmul.f32 %v197, %v229
    %v235 = vmul.f32 %v198, %v225
    %v239 = vcombine.high %v233, %v233
    %v240 = vcombine.high %v234, %v234
    %241 = vrot.lane.b32.xlu0 %v233, 15
    %v242 = vpop.permute.xlu0 %241
    %243 = vrot.lane.b32.xlu0 %v239, 15
    %v244 = vpop.permute.xlu0 %243
    %245 = vrot.lane.b32.xlu0 %v234, 15
    %v246 = vpop.permute.xlu0 %245
    %247 = vrot.lane.b32.xlu0 %v240, 15
    %v248 = vpop.permute.xlu0 %247
    %249 = vrot.lane.b32.xlu0 %v235, 15
    %v250 = vpop.permute.xlu0 %249
    %vm251 = vcmask 121856
    %v252 = vsel %vm251, %v242, %v244
    %v253 = vsel %vm251, %v244, %v246
    %v254 = vsel %vm251, %v246, %v248
    %v255 = vsel %vm251, %v248, %v250
    %260 = vst [vmem:[#allocation3 + $0x20] sm:$0xf] %v252
    %261 = vst [vmem:[#allocation3 + $0x28] sm:$0xf] %v253
    %262 = vst [vmem:[#allocation3 + $0x30] sm:$0xf] %v254
    %263 = vst [vmem:[#allocation3 + $0x38] sm:$0xf] %v255
    %v264 = vld [vmem:[#allocation2] sm:$0xff]
    %v265 = vld [vmem:[#allocation2 + $0x8] sm:$0xff]
    %v266 = vld [vmem:[#allocation2 + $0x10] sm:$0xf]
    %s267 = scalar_lea.vmem [#allocation7], 3
    %v268 = vld [vmem:[%s267] ss:$8 sm:$0xf]
    %v270 = vlaneseq
    %v271 = vshrl.u32 %v270, 7
    %v272 = vsub.s32 0, %v271
    %v273 = vrot.slane %v268, %v272
    %v274 = vlaneseq
    %v275 = vshrl.u32 %v274, 7
    %v276 = vsub.s32 1, %v275
    %v277 = vrot.slane %v268, %v276
    %v278 = vlaneseq
    %v279 = vshrl.u32 %v278, 7
    %v280 = vsub.s32 2, %v279
    %v281 = vrot.slane %v268, %v280
    %v282 = vlaneseq
    %v283 = vshrl.u32 %v282, 7
    %v284 = vsub.s32 3, %v283
    %v285 = vrot.slane %v268, %v284
    %v286 = vcombine.low %v273, %v277
    %v287 = vcombine.low %v281, %v285
    %288 = vrot.lane.b32.xlu0 %v286, 127
    %v289 = vpop.permute.xlu0 %288
    %290 = vrot.lane.b32.xlu0 %v287, 127
    %v291 = vpop.permute.xlu0 %290
    %v292 = vrot.slane %v289, 4
    %v293 = vrot.slane %v291, 4
    %vm294 = vcmask 1039360
    %v295 = vsel %vm294, %v292, %v289
    %v296 = vsel %vm90, %v292, %v293
    %v297 = vsel %vm294, %v296, %v291
    %v301 = vmul.f32 %v264, %v295
    %v302 = vmul.f32 %v265, %v297
    %v303 = vmul.f32 %v266, %v293
    %v307 = vcombine.low %v301, %v301
    %v308 = vcombine.low %v302, %v302
    %v309 = vcombine.low %v303, %v303
    %310 = vrot.lane.b32.xlu0 %v307, 1
    %v311 = vpop.permute.xlu0 %310
    %312 = vrot.lane.b32.xlu0 %v301, 1
    %v313 = vpop.permute.xlu0 %312
    %314 = vrot.lane.b32.xlu0 %v308, 1
    %v315 = vpop.permute.xlu0 %314
    %316 = vrot.lane.b32.xlu0 %v302, 1
    %v317 = vpop.permute.xlu0 %316
    %318 = vrot.lane.b32.xlu0 %v309, 1
    %v319 = vpop.permute.xlu0 %318
    %vm320 = vcmask 7168
    %v321 = vsel %vm320, %v311, %v313
    %v322 = vsel %vm320, %v313, %v315
    %v323 = vsel %vm320, %v315, %v317
    %v324 = vsel %vm320, %v317, %v319
    %329 = vst [vmem:[#allocation3 + $0x20] sm:$0xf0] %v321
    %330 = vst [vmem:[#allocation3 + $0x28] sm:$0xf0] %v322
    %331 = vst [vmem:[#allocation3 + $0x30] sm:$0xf0] %v323
    %332 = vst [vmem:[#allocation3 + $0x38] sm:$0xf0] %v324
    %v333 = vld [vmem:[#allocation2 + $0x4] sm:$0xff]
    %v334 = vld [vmem:[#allocation2 + $0xc] sm:$0xff]
    %v337 = vcombine.high %v333, %v333
    %v338 = vcombine.high %v334, %v334
    %341 = vst [vmem:[#allocation3 + $0x40] sm:$0xf] %v333
    %342 = vst [vmem:[#allocation3 + $0x48] sm:$0xf] %v337
    %343 = vst [vmem:[#allocation3 + $0x50] sm:$0xf] %v334
    %344 = vst [vmem:[#allocation3 + $0x58] sm:$0xf] %v338
    %v345 = vld [vmem:[#allocation2 + $0x4] sm:$0xff]
    %v346 = vld [vmem:[#allocation2 + $0xc] sm:$0xff]
    %v347 = vld [vmem:[#allocation2 + $0x14] sm:$0xf]
    %s348 = scalar_lea.vmem [#allocation7], 5
    %v349 = vld [vmem:[%s348] ss:$8 sm:$0xf]
    %v351 = vlaneseq
    %v352 = vshrl.u32 %v351, 7
    %v353 = vsub.s32 0, %v352
    %v354 = vrot.slane %v349, %v353
    %v355 = vlaneseq
    %v356 = vshrl.u32 %v355, 7
    %v357 = vsub.s32 1, %v356
    %v358 = vrot.slane %v349, %v357
    %v359 = vlaneseq
    %v360 = vshrl.u32 %v359, 7
    %v361 = vsub.s32 2, %v360
    %v362 = vrot.slane %v349, %v361
    %v363 = vlaneseq
    %v364 = vshrl.u32 %v363, 7
    %v365 = vsub.s32 3, %v364
    %v366 = vrot.slane %v349, %v365
    %v367 = vcombine.low %v354, %v358
    %v368 = vcombine.low %v362, %v366
    %369 = vrot.lane.b32.xlu0 %v367, 1
    %v370 = vpop.permute.xlu0 %369
    %371 = vrot.lane.b32.xlu0 %v368, 1
    %v372 = vpop.permute.xlu0 %371
    %v373 = vrot.slane %v370, 4
    %v374 = vrot.slane %v372, 4
    %v375 = vsel %vm320, %v373, %v370
    %v376 = vsel %vm90, %v373, %v374
    %v377 = vsel %vm320, %v376, %v372
    %v381 = vmul.f32 %v345, %v375
    %v382 = vmul.f32 %v346, %v377
    %v383 = vmul.f32 %v347, %v374
    %v387 = vcombine.low %v381, %v381
    %v388 = vcombine.low %v382, %v382
    %v389 = vcombine.low %v383, %v383
    %390 = vrot.lane.b32.xlu0 %v387, 127
    %v391 = vpop.permute.xlu0 %390
    %392 = vrot.lane.b32.xlu0 %v381, 127
    %v393 = vpop.permute.xlu0 %392
    %394 = vrot.lane.b32.xlu0 %v388, 127
    %v395 = vpop.permute.xlu0 %394
    %396 = vrot.lane.b32.xlu0 %v382, 127
    %v397 = vpop.permute.xlu0 %396
    %398 = vrot.lane.b32.xlu0 %v389, 127
    %v399 = vpop.permute.xlu0 %398
    %v400 = vsel %vm294, %v391, %v393
    %v401 = vsel %vm294, %v393, %v395
    %v402 = vsel %vm294, %v395, %v397
    %v403 = vsel %vm294, %v397, %v399
    %408 = vst [vmem:[#allocation3 + $0x40] sm:$0xf0] %v400
    %409 = vst [vmem:[#allocation3 + $0x48] sm:$0xf0] %v401
    %410 = vst [vmem:[#allocation3 + $0x50] sm:$0xf0] %v402
    %411 = vst [vmem:[#allocation3 + $0x58] sm:$0xf0] %v403
    %v412 = vld [vmem:[#allocation2 + $0x4] sm:$0xff]
    %v413 = vld [vmem:[#allocation2 + $0xc] sm:$0xff]
    %v414 = vld [vmem:[#allocation2 + $0x14] sm:$0xf]
    %s415 = scalar_lea.vmem [#allocation7], 6
    %v416 = vld [vmem:[%s415] ss:$8 sm:$0xf]
    %v418 = vlaneseq
    %v419 = vshrl.u32 %v418, 7
    %v420 = vsub.s32 0, %v419
    %v421 = vrot.slane %v416, %v420
    %v422 = vlaneseq
    %v423 = vshrl.u32 %v422, 7
    %v424 = vsub.s32 1, %v423
    %v425 = vrot.slane %v416, %v424
    %v426 = vlaneseq
    %v427 = vshrl.u32 %v426, 7
    %v428 = vsub.s32 2, %v427
    %v429 = vrot.slane %v416, %v428
    %v430 = vlaneseq
    %v431 = vshrl.u32 %v430, 7
    %v432 = vsub.s32 3, %v431
    %v433 = vrot.slane %v416, %v432
    %v434 = vcombine.low %v421, %v425
    %v435 = vcombine.low %v429, %v433
    %436 = vrot.lane.b32.xlu0 %v434, 15
    %v437 = vpop.permute.xlu0 %436
    %438 = vrot.lane.b32.xlu0 %v435, 15
    %v439 = vpop.permute.xlu0 %438
    %v440 = vrot.slane %v437, 4
    %v441 = vrot.slane %v439, 4
    %v442 = vsel %vm251, %v440, %v437
    %v443 = vsel %vm90, %v440, %v441
    %v444 = vsel %vm251, %v443, %v439
    %v448 = vmul.f32 %v412, %v442
    %v449 = vmul.f32 %v413, %v444
    %v450 = vmul.f32 %v414, %v441
    %v454 = vcombine.high %v448, %v448
    %v455 = vcombine.high %v449, %v449
    %456 = vrot.lane.b32.xlu0 %v448, 113
    %v457 = vpop.permute.xlu0 %456
    %458 = vrot.lane.b32.xlu0 %v454, 113
    %v459 = vpop.permute.xlu0 %458
    %460 = vrot.lane.b32.xlu0 %v449, 113
    %v461 = vpop.permute.xlu0 %460
    %462 = vrot.lane.b32.xlu0 %v455, 113
    %v463 = vpop.permute.xlu0 %462
    %464 = vrot.lane.b32.xlu0 %v450, 113
    %v465 = vpop.permute.xlu0 %464
    %v466 = vsel %vm226, %v457, %v459
    %v467 = vsel %vm226, %v459, %v461
    %v468 = vsel %vm226, %v461, %v463
    %v469 = vsel %vm226, %v463, %v465
    %474 = vst [vmem:[#allocation3 + $0x60] sm:$0xf] %v466
    %475 = vst [vmem:[#allocation3 + $0x68] sm:$0xf] %v467
    %476 = vst [vmem:[#allocation3 + $0x70] sm:$0xf] %v468
    %477 = vst [vmem:[#allocation3 + $0x78] sm:$0xf] %v469
    %v478 = vld [vmem:[#allocation2 + $0x4] sm:$0xff]
    %v479 = vld [vmem:[#allocation2 + $0xc] sm:$0xff]
    %v480 = vld [vmem:[#allocation2 + $0x14] sm:$0xf]
    %s481 = scalar_lea.vmem [#allocation7], 7
    %v482 = vld [vmem:[%s481] ss:$8 sm:$0xf]
    %v484 = vlaneseq
    %v485 = vshrl.u32 %v484, 7
    %v486 = vsub.s32 0, %v485
    %v487 = vrot.slane %v482, %v486
    %v488 = vlaneseq
    %v489 = vshrl.u32 %v488, 7
    %v490 = vsub.s32 1, %v489
    %v491 = vrot.slane %v482, %v490
    %v492 = vlaneseq
    %v493 = vshrl.u32 %v492, 7
    %v494 = vsub.s32 2, %v493
    %v495 = vrot.slane %v482, %v494
    %v496 = vlaneseq
    %v497 = vshrl.u32 %v496, 7
    %v498 = vsub.s32 3, %v497
    %v499 = vrot.slane %v482, %v498
    %v500 = vcombine.low %v487, %v491
    %v501 = vcombine.low %v495, %v499
    %502 = vrot.lane.b32.xlu0 %v500, 16
    %v503 = vpop.permute.xlu0 %502
    %504 = vrot.lane.b32.xlu0 %v501, 16
    %v505 = vpop.permute.xlu0 %504
    %v506 = vrot.slane %v503, 4
    %v507 = vrot.slane %v505, 4
    %v508 = vsel %vm183, %v506, %v503
    %v509 = vsel %vm90, %v506, %v507
    %v510 = vsel %vm183, %v509, %v505
    %v514 = vmul.f32 %v478, %v508
    %v515 = vmul.f32 %v479, %v510
    %v516 = vmul.f32 %v480, %v507
    %v520 = vcombine.low %v514, %v514
    %v521 = vcombine.low %v515, %v515
    %v522 = vcombine.low %v516, %v516
    %523 = vrot.lane.b32.xlu0 %v520, 112
    %v524 = vpop.permute.xlu0 %523
    %525 = vrot.lane.b32.xlu0 %v514, 112
    %v526 = vpop.permute.xlu0 %525
    %527 = vrot.lane.b32.xlu0 %v521, 112
    %v528 = vpop.permute.xlu0 %527
    %529 = vrot.lane.b32.xlu0 %v515, 112
    %v530 = vpop.permute.xlu0 %529
    %531 = vrot.lane.b32.xlu0 %v522, 112
    %v532 = vpop.permute.xlu0 %531
    %v533 = vsel %vm157, %v524, %v526
    %v534 = vsel %vm157, %v526, %v528
    %v535 = vsel %vm157, %v528, %v530
    %v536 = vsel %vm157, %v530, %v532
    %541 = vst [vmem:[#allocation3 + $0x60] sm:$0xf0] %v533
    %542 = vst [vmem:[#allocation3 + $0x68] sm:$0xf0] %v534
    %543 = vst [vmem:[#allocation3 + $0x70] sm:$0xf0] %v535
    %544 = vst [vmem:[#allocation3 + $0x78] sm:$0xf0] %v536
    %v545 = vld [vmem:[#allocation2 + $0x4] sm:$0xff]
    %v546 = vld [vmem:[#allocation2 + $0xc] sm:$0xff]
    %v547 = vld [vmem:[#allocation2 + $0x14] sm:$0xf]
    %s548 = scalar_lea.vmem [#allocation7], 32
    %v549 = vld [vmem:[%s548] ss:$8 sm:$0xf]
    %v551 = vlaneseq
    %v552 = vshrl.u32 %v551, 7
    %v553 = vsub.s32 0, %v552
    %v554 = vrot.slane %v549, %v553
    %v555 = vlaneseq
    %v556 = vshrl.u32 %v555, 7
    %v557 = vsub.s32 1, %v556
    %v558 = vrot.slane %v549, %v557
    %v559 = vlaneseq
    %v560 = vshrl.u32 %v559, 7
    %v561 = vsub.s32 2, %v560
    %v562 = vrot.slane %v549, %v561
    %v563 = vlaneseq
    %v564 = vshrl.u32 %v563, 7
    %v565 = vsub.s32 3, %v564
    %v566 = vrot.slane %v549, %v565
    %v567 = vcombine.low %v554, %v558
    %v568 = vcombine.low %v562, %v566
    %569 = vrot.lane.b32.xlu0 %v567, 17
    %v570 = vpop.permute.xlu0 %569
    %571 = vrot.lane.b32.xlu0 %v568, 17
    %v572 = vpop.permute.xlu0 %571
    %v573 = vrot.slane %v570, 4
    %v574 = vrot.slane %v572, 4
    %v575 = vsel %vm114, %v573, %v570
    %v576 = vsel %vm90, %v573, %v574
    %v577 = vsel %vm114, %v576, %v572
    %v581 = vmul.f32 %v545, %v575
    %v582 = vmul.f32 %v546, %v577
    %v583 = vmul.f32 %v547, %v574
    %v587 = vcombine.high %v581, %v581
    %v588 = vcombine.high %v582, %v582
    %589 = vrot.lane.b32.xlu0 %v581, 111
    %v590 = vpop.permute.xlu0 %589
    %591 = vrot.lane.b32.xlu0 %v587, 111
    %v592 = vpop.permute.xlu0 %591
    %593 = vrot.lane.b32.xlu0 %v582, 111
    %v594 = vpop.permute.xlu0 %593
    %595 = vrot.lane.b32.xlu0 %v588, 111
    %v596 = vpop.permute.xlu0 %595
    %597 = vrot.lane.b32.xlu0 %v583, 111
    %v598 = vpop.permute.xlu0 %597
    %v599 = vsel %vm88, %v590, %v592
    %v600 = vsel %vm88, %v592, %v594
    %v601 = vsel %vm88, %v594, %v596
    %v602 = vsel %vm88, %v596, %v598
    %607 = vst [vmem:[#allocation3 + $0x80] sm:$0xf] %v599
    %608 = vst [vmem:[#allocation3 + $0x88] sm:$0xf] %v600
    %609 = vst [vmem:[#allocation3 + $0x90] sm:$0xf] %v601
    %610 = vst [vmem:[#allocation3 + $0x98] sm:$0xf] %v602
    %v611 = vld [vmem:[%s1] sm:$0xf]
    %v612 = vld [vmem:[#allocation3] sm:$0xff]
    %v613 = vld [vmem:[#allocation3 + $0x8] sm:$0xff]
    %v614 = vld [vmem:[#allocation3 + $0x10] sm:$0xff]
    %v615 = vld [vmem:[#allocation3 + $0x18] sm:$0xff]
    %v616 = vld [vmem:[#allocation3 + $0x20] sm:$0xff]
    %v617 = vld [vmem:[#allocation3 + $0x28] sm:$0xff]
    %v618 = vld [vmem:[#allocation3 + $0x30] sm:$0xff]
    %v619 = vld [vmem:[#allocation3 + $0x38] sm:$0xff]
    %v620 = vld [vmem:[#allocation3 + $0x40] sm:$0xff]
    %v621 = vld [vmem:[#allocation3 + $0x48] sm:$0xff]
    %v622 = vld [vmem:[#allocation3 + $0x50] sm:$0xff]
    %v623 = vld [vmem:[#allocation3 + $0x58] sm:$0xff]
    %v624 = vld [vmem:[#allocation3 + $0x60] sm:$0xff]
    %v625 = vld [vmem:[#allocation3 + $0x68] sm:$0xff]
    %v626 = vld [vmem:[#allocation3 + $0x70] sm:$0xff]
    %v627 = vld [vmem:[#allocation3 + $0x78] sm:$0xff]
    %v628 = vld [vmem:[#allocation3 + $0x80] sm:$0xf]
    %v629 = vld [vmem:[#allocation3 + $0x88] sm:$0xf]
    %v630 = vld [vmem:[#allocation3 + $0x90] sm:$0xf]
    %v631 = vld [vmem:[#allocation3 + $0x98] sm:$0xf]
    %v632 = vld [vmem:[%s2] sm:$0xf]
    %634 = vset.pattern.permute.xlu0 0
    %635 = vperm.xlu0 %634, %v632
    %v636 = vpop.permute.xlu0 %635
    %vm638 = vcmask 293888
    %v640 = vsel %vm638, %v611, 0
    %v643 = vsel %vm90, %v628, 0
    %v646 = vsel %vm90, %v629, 0
    %v649 = vsel %vm90, %v630, 0
    %v652 = vsel %vm90, %v631, 0
    %654 = vmatprep.subr.mxu0 %v613
    %655 = vmatpush1.msra.mxu0 %v612
    %656 = vmatprep.subr.mxu0 %v617
    %657 = vmatpush1.msra.mxu0 %v616
    %658 = vmatprep.subr.mxu0 %v621
    %659 = vmatpush1.msra.mxu0 %v620
    %660 = vmatprep.subr.mxu0 %v625
    %661 = vmatpush1.msra.mxu0 %v624
    %662 = vmatprep.subr.mxu0 %v646
    %663 = vmatpush1.msra.mxu0 %v643
    %664 = vmatprep.subr.mxu0 0.0
    %665 = vmatpush1.msra.mxu0 0.0
    %666 = vmatprep.subr.mxu0 0.0
    %667 = vmatpush1.msra.mxu0 0.0
    %668 = vmatprep.subr.mxu0 0.0
    %669 = vmatpush1.msra.mxu0 0.0
    %670 = vmatprep.subr.mxu0 0.0
    %671 = vmatpush1.msra.mxu0 0.0
    %672 = vmatprep.subr.mxu0 0.0
    %673 = vmatpush1.msra.mxu0 0.0
    %674 = vmatprep.subr.mxu0 0.0
    %675 = vmatpush1.msra.mxu0 0.0
    %676 = vmatprep.subr.mxu0 0.0
    %677 = vmatpush1.msra.mxu0 0.0
    %678 = vmatprep.subr.mxu0 0.0
    %679 = vmatpush1.msra.mxu0 0.0
    %680 = vmatprep.subr.mxu0 0.0
    %681 = vmatpush1.msra.mxu0 0.0
    %682 = vmatprep.subr.mxu0 0.0
    %683 = vmatpush1.msra.mxu0 0.0
    %684 = vmatprep.subr.mxu0 0.0
    %685 = vmatpush1.msra.mxu0 0.0
    %686 = vmatprep.subr.mxu0 0.0
    %687 = vmatpush1.msra.mxu0 0.0
    %688 = vmatprep.subr.mxu0 0.0
    %689 = vmatpush1.msra.mxu0 0.0
    %690 = vmatprep.subr.mxu0 0.0
    %691 = vmatpush1.msra.mxu0 0.0
    %692 = vmatprep.subr.mxu0 0.0
    %693 = vmatpush1.msra.mxu0 0.0
    %694 = vmatprep.subr.mxu0 0.0
    %695 = vmatpush1.msra.mxu0 0.0
    %696 = vmatprep.subr.mxu0 0.0
    %697 = vmatpush1.msra.mxu0 0.0
    %698 = vmatprep.subr.mxu0 0.0
    %699 = vmatpush1.msra.mxu0 0.0
    %700 = vmatprep.subr.mxu0 0.0
    %701 = vmatpush1.msra.mxu0 0.0
    %702 = vmatprep.subr.mxu0 0.0
    %703 = vmatpush1.msra.mxu0 0.0
    %704 = vmatprep.subr.mxu0 0.0
    %705 = vmatpush1.msra.mxu0 0.0
    %706 = vmatprep.subr.mxu0 0.0
    %707 = vmatpush1.msra.mxu0 0.0
    %708 = vmatprep.subr.mxu0 0.0
    %709 = vmatpush1.msra.mxu0 0.0
    %710 = vmatprep.subr.mxu0 0.0
    %711 = vmatpush1.msra.mxu0 0.0
    %712 = vmatprep.subr.mxu0 0.0
    %713 = vmatpush1.msra.mxu0 0.0
    %714 = vmatprep.subr.mxu0 0.0
    %715 = vmatpush1.msra.mxu0 0.0
    %716 = vmatprep.subr.mxu0 0.0
    %717 = vmatpush1.msra.mxu0 0.0
    %718 = vmatprep.mubr.f32.mxu0 0.0
    %719 = vmatmul.mubr.f32.gmra.mrb[0].mxu0 %v640
    %v720 = vpop.f32.mrb[0].mxu0
    %v721 = vadd.f32 %v636, %v720
    %v722 = vpop.f32.mrb[0].mxu0
    %v723 = vadd.f32 %v636, %v722
    %724 = vdwg.mxu0
    %725 = vmatprep.subr.mxu0 %v615
    %726 = vmatpush1.msra.mxu0 %v614
    %727 = vmatprep.subr.mxu0 %v619
    %728 = vmatpush1.msra.mxu0 %v618
    %729 = vmatprep.subr.mxu0 %v623
    %730 = vmatpush1.msra.mxu0 %v622
    %731 = vmatprep.subr.mxu0 %v627
    %732 = vmatpush1.msra.mxu0 %v626
    %733 = vmatprep.subr.mxu0 %v652
    %734 = vmatpush1.msra.mxu0 %v649
    %735 = vmatprep.subr.mxu0 0.0
    %736 = vmatpush1.msra.mxu0 0.0
    %737 = vmatprep.subr.mxu0 0.0
    %738 = vmatpush1.msra.mxu0 0.0
    %739 = vmatprep.subr.mxu0 0.0
    %740 = vmatpush1.msra.mxu0 0.0
    %741 = vmatprep.subr.mxu0 0.0
    %742 = vmatpush1.msra.mxu0 0.0
    %743 = vmatprep.subr.mxu0 0.0
    %744 = vmatpush1.msra.mxu0 0.0
    %745 = vmatprep.subr.mxu0 0.0
    %746 = vmatpush1.msra.mxu0 0.0
    %747 = vmatprep.subr.mxu0 0.0
    %748 = vmatpush1.msra.mxu0 0.0
    %749 = vmatprep.subr.mxu0 0.0
    %750 = vmatpush1.msra.mxu0 0.0
    %751 = vmatprep.subr.mxu0 0.0
    %752 = vmatpush1.msra.mxu0 0.0
    %753 = vmatprep.subr.mxu0 0.0
    %754 = vmatpush1.msra.mxu0 0.0
    %755 = vmatprep.subr.mxu0 0.0
    %756 = vmatpush1.msra.mxu0 0.0
    %757 = vmatprep.subr.mxu0 0.0
    %758 = vmatpush1.msra.mxu0 0.0
    %759 = vmatprep.subr.mxu0 0.0
    %760 = vmatpush1.msra.mxu0 0.0
    %761 = vmatprep.subr.mxu0 0.0
    %762 = vmatpush1.msra.mxu0 0.0
    %763 = vmatprep.subr.mxu0 0.0
    %764 = vmatpush1.msra.mxu0 0.0
    %765 = vmatprep.subr.mxu0 0.0
    %766 = vmatpush1.msra.mxu0 0.0
    %767 = vmatprep.subr.mxu0 0.0
    %768 = vmatpush1.msra.mxu0 0.0
    %769 = vmatprep.subr.mxu0 0.0
    %770 = vmatpush1.msra.mxu0 0.0
    %771 = vmatprep.subr.mxu0 0.0
    %772 = vmatpush1.msra.mxu0 0.0
    %773 = vmatprep.subr.mxu0 0.0
    %774 = vmatpush1.msra.mxu0 0.0
    %775 = vmatprep.subr.mxu0 0.0
    %776 = vmatpush1.msra.mxu0 0.0
    %777 = vmatprep.subr.mxu0 0.0
    %778 = vmatpush1.msra.mxu0 0.0
    %779 = vmatprep.subr.mxu0 0.0
    %780 = vmatpush1.msra.mxu0 0.0
    %781 = vmatprep.subr.mxu0 0.0
    %782 = vmatpush1.msra.mxu0 0.0
    %783 = vmatprep.subr.mxu0 0.0
    %784 = vmatpush1.msra.mxu0 0.0
    %785 = vmatprep.subr.mxu0 0.0
    %786 = vmatpush1.msra.mxu0 0.0
    %787 = vmatprep.subr.mxu0 0.0
    %788 = vmatpush1.msra.mxu0 0.0
    %789 = vmatprep.mubr.f32.mxu0 0.0
    %790 = vmatmul.mubr.f32.gmra.mrb[0].mxu0 %v640
    %v791 = vpop.f32.mrb[0].mxu0
    %v792 = vadd.f32 %v636, %v791
    %v793 = vpop.f32.mrb[0].mxu0
    %v794 = vadd.f32 %v636, %v793
    %795 = vdwg.mxu0
    %v796 = vmax.f32 %v721, 0.0
    %v797 = vmax.f32 %v723, 0.0
    %v798 = vmax.f32 %v792, 0.0
    %v799 = vmax.f32 %v794, 0.0
    %v804 = vcombine.low %v796, %v797
    %v805 = vcombine.low %v798, %v799
    %808 = vst [vmem:[#allocation2 + $0x4] sm:$0xff] %v804
    %809 = vst [vmem:[#allocation2 + $0xc] sm:$0xff] %v805
    %v810 = vld [vmem:[#allocation2] sm:$0xff]
    %v811 = vld [vmem:[#allocation2 + $0x8] sm:$0xff]
    %v812 = vld [vmem:[#allocation2 + $0x10] sm:$0xf]
    %v813 = vld [vmem:[#allocation7] ss:$8 sm:$0xf]
    %v815 = vlaneseq
    %v816 = vshrl.u32 %v815, 7
    %v817 = vsub.s32 0, %v816
    %v818 = vrot.slane %v813, %v817
    %v819 = vlaneseq
    %v820 = vshrl.u32 %v819, 7
    %v821 = vsub.s32 1, %v820
    %v822 = vrot.slane %v813, %v821
    %v823 = vlaneseq
    %v824 = vshrl.u32 %v823, 7
    %v825 = vsub.s32 2, %v824
    %v826 = vrot.slane %v813, %v825
    %v827 = vlaneseq
    %v828 = vshrl.u32 %v827, 7
    %v829 = vsub.s32 3, %v828
    %v830 = vrot.slane %v813, %v829
    %v831 = vcombine.low %v818, %v822
    %v832 = vcombine.low %v826, %v830
    %833 = vrot.lane.b32.xlu0 %v831, 111
    %v834 = vpop.permute.xlu0 %833
    %835 = vrot.lane.b32.xlu0 %v832, 111
    %v836 = vpop.permute.xlu0 %835
    %v837 = vrot.slane %v834, 4
    %v838 = vrot.slane %v836, 4
    %v839 = vsel %vm88, %v837, %v834
    %v840 = vsel %vm90, %v837, %v838
    %v841 = vsel %vm88, %v840, %v836
    %v845 = vmul.f32 %v810, %v839
    %v846 = vmul.f32 %v811, %v841
    %v847 = vmul.f32 %v812, %v838
    %v851 = vcombine.high %v845, %v845
    %v852 = vcombine.high %v846, %v846
    %853 = vrot.lane.b32.xlu0 %v845, 17
    %v854 = vpop.permute.xlu0 %853
    %855 = vrot.lane.b32.xlu0 %v851, 17
    %v856 = vpop.permute.xlu0 %855
    %857 = vrot.lane.b32.xlu0 %v846, 17
    %v858 = vpop.permute.xlu0 %857
    %859 = vrot.lane.b32.xlu0 %v852, 17
    %v860 = vpop.permute.xlu0 %859
    %861 = vrot.lane.b32.xlu0 %v847, 17
    %v862 = vpop.permute.xlu0 %861
    %v863 = vsel %vm114, %v854, %v856
    %v864 = vsel %vm114, %v856, %v858
    %v865 = vsel %vm114, %v858, %v860
    %v866 = vsel %vm114, %v860, %v862
    %871 = vst [vmem:[#allocation3] sm:$0xf] %v863
    %872 = vst [vmem:[#allocation3 + $0x8] sm:$0xf] %v864
    %873 = vst [vmem:[#allocation3 + $0x10] sm:$0xf] %v865
    %874 = vst [vmem:[#allocation3 + $0x18] sm:$0xf] %v866
    %v875 = vld [vmem:[#allocation2] sm:$0xff]
    %v876 = vld [vmem:[#allocation2 + $0x8] sm:$0xff]
    %v877 = vld [vmem:[#allocation2 + $0x10] sm:$0xf]
    %v878 = vld [vmem:[%s130] ss:$8 sm:$0xf]
    %v880 = vlaneseq
    %v881 = vshrl.u32 %v880, 7
    %v882 = vsub.s32 0, %v881
    %v883 = vrot.slane %v878, %v882
    %v884 = vlaneseq
    %v885 = vshrl.u32 %v884, 7
    %v886 = vsub.s32 1, %v885
    %v887 = vrot.slane %v878, %v886
    %v888 = vlaneseq
    %v889 = vshrl.u32 %v888, 7
    %v890 = vsub.s32 2, %v889
    %v891 = vrot.slane %v878, %v890
    %v892 = vlaneseq
    %v893 = vshrl.u32 %v892, 7
    %v894 = vsub.s32 3, %v893
    %v895 = vrot.slane %v878, %v894
    %v896 = vcombine.low %v883, %v887
    %v897 = vcombine.low %v891, %v895
    %898 = vrot.lane.b32.xlu0 %v896, 112
    %v899 = vpop.permute.xlu0 %898
    %900 = vrot.lane.b32.xlu0 %v897, 112
    %v901 = vpop.permute.xlu0 %900
    %v902 = vrot.slane %v899, 4
    %v903 = vrot.slane %v901, 4
    %v904 = vsel %vm157, %v902, %v899
    %v905 = vsel %vm90, %v902, %v903
    %v906 = vsel %vm157, %v905, %v901
    %v910 = vmul.f32 %v875, %v904
    %v911 = vmul.f32 %v876, %v906
    %v912 = vmul.f32 %v877, %v903
    %v916 = vcombine.low %v910, %v910
    %v917 = vcombine.low %v911, %v911
    %v918 = vcombine.low %v912, %v912
    %919 = vrot.lane.b32.xlu0 %v916, 16
    %v920 = vpop.permute.xlu0 %919
    %921 = vrot.lane.b32.xlu0 %v910, 16
    %v922 = vpop.permute.xlu0 %921
    %923 = vrot.lane.b32.xlu0 %v917, 16
    %v924 = vpop.permute.xlu0 %923
    %925 = vrot.lane.b32.xlu0 %v911, 16
    %v926 = vpop.permute.xlu0 %925
    %927 = vrot.lane.b32.xlu0 %v918, 16
    %v928 = vpop.permute.xlu0 %927
    %v929 = vsel %vm183, %v920, %v922
    %v930 = vsel %vm183, %v922, %v924
    %v931 = vsel %vm183, %v924, %v926
    %v932 = vsel %vm183, %v926, %v928
    %937 = vst [vmem:[#allocation3] sm:$0xf0] %v929
    %938 = vst [vmem:[#allocation3 + $0x8] sm:$0xf0] %v930
    %939 = vst [vmem:[#allocation3 + $0x10] sm:$0xf0] %v931
    %940 = vst [vmem:[#allocation3 + $0x18] sm:$0xf0] %v932
    %v941 = vld [vmem:[#allocation2] sm:$0xff]
    %v942 = vld [vmem:[#allocation2 + $0x8] sm:$0xff]
    %v943 = vld [vmem:[#allocation2 + $0x10] sm:$0xf]
    %v944 = vld [vmem:[%s199] ss:$8 sm:$0xf]
    %v946 = vlaneseq
    %v947 = vshrl.u32 %v946, 7
    %v948 = vsub.s32 0, %v947
    %v949 = vrot.slane %v944, %v948
    %v950 = vlaneseq
    %v951 = vshrl.u32 %v950, 7
    %v952 = vsub.s32 1, %v951
    %v953 = vrot.slane %v944, %v952
    %v954 = vlaneseq
    %v955 = vshrl.u32 %v954, 7
    %v956 = vsub.s32 2, %v955
    %v957 = vrot.slane %v944, %v956
    %v958 = vlaneseq
    %v959 = vshrl.u32 %v958, 7
    %v960 = vsub.s32 3, %v959
    %v961 = vrot.slane %v944, %v960
    %v962 = vcombine.low %v949, %v953
    %v963 = vcombine.low %v957, %v961
    %964 = vrot.lane.b32.xlu0 %v962, 113
    %v965 = vpop.permute.xlu0 %964
    %966 = vrot.lane.b32.xlu0 %v963, 113
    %v967 = vpop.permute.xlu0 %966
    %v968 = vrot.slane %v965, 4
    %v969 = vrot.slane %v967, 4
    %v970 = vsel %vm226, %v968, %v965
    %v971 = vsel %vm90, %v968, %v969
    %v972 = vsel %vm226, %v971, %v967
    %v976 = vmul.f32 %v941, %v970
    %v977 = vmul.f32 %v942, %v972
    %v978 = vmul.f32 %v943, %v969
    %v982 = vcombine.high %v976, %v976
    %v983 = vcombine.high %v977, %v977
    %984 = vrot.lane.b32.xlu0 %v976, 15
    %v985 = vpop.permute.xlu0 %984
    %986 = vrot.lane.b32.xlu0 %v982, 15
    %v987 = vpop.permute.xlu0 %986
    %988 = vrot.lane.b32.xlu0 %v977, 15
    %v989 = vpop.permute.xlu0 %988
    %990 = vrot.lane.b32.xlu0 %v983, 15
    %v991 = vpop.permute.xlu0 %990
    %992 = vrot.lane.b32.xlu0 %v978, 15
    %v993 = vpop.permute.xlu0 %992
    %v994 = vsel %vm251, %v985, %v987
    %v995 = vsel %vm251, %v987, %v989
    %v996 = vsel %vm251, %v989, %v991
    %v997 = vsel %vm251, %v991, %v993
    %1002 = vst [vmem:[#allocation3 + $0x20] sm:$0xf] %v994
    %1003 = vst [vmem:[#allocation3 + $0x28] sm:$0xf] %v995
    %1004 = vst [vmem:[#allocation3 + $0x30] sm:$0xf] %v996
    %1005 = vst [vmem:[#allocation3 + $0x38] sm:$0xf] %v997
    %v1006 = vld [vmem:[#allocation2] sm:$0xff]
    %v1007 = vld [vmem:[#allocation2 + $0x8] sm:$0xff]
    %v1008 = vld [vmem:[#allocation2 + $0x10] sm:$0xf]
    %v1009 = vld [vmem:[%s267] ss:$8 sm:$0xf]
    %v1011 = vlaneseq
    %v1012 = vshrl.u32 %v1011, 7
    %v1013 = vsub.s32 0, %v1012
    %v1014 = vrot.slane %v1009, %v1013
    %v1015 = vlaneseq
    %v1016 = vshrl.u32 %v1015, 7
    %v1017 = vsub.s32 1, %v1016
    %v1018 = vrot.slane %v1009, %v1017
    %v1019 = vlaneseq
    %v1020 = vshrl.u32 %v1019, 7
    %v1021 = vsub.s32 2, %v1020
    %v1022 = vrot.slane %v1009, %v1021
    %v1023 = vlaneseq
    %v1024 = vshrl.u32 %v1023, 7
    %v1025 = vsub.s32 3, %v1024
    %v1026 = vrot.slane %v1009, %v1025
    %v1027 = vcombine.low %v1014, %v1018
    %v1028 = vcombine.low %v1022, %v1026
    %1029 = vrot.lane.b32.xlu0 %v1027, 127
    %v1030 = vpop.permute.xlu0 %1029
    %1031 = vrot.lane.b32.xlu0 %v1028, 127
    %v1032 = vpop.permute.xlu0 %1031
    %v1033 = vrot.slane %v1030, 4
    %v1034 = vrot.slane %v1032, 4
    %v1035 = vsel %vm294, %v1033, %v1030
    %v1036 = vsel %vm90, %v1033, %v1034
    %v1037 = vsel %vm294, %v1036, %v1032
    %v1041 = vmul.f32 %v1006, %v1035
    %v1042 = vmul.f32 %v1007, %v1037
    %v1043 = vmul.f32 %v1008, %v1034
    %v1047 = vcombine.low %v1041, %v1041
    %v1048 = vcombine.low %v1042, %v1042
    %v1049 = vcombine.low %v1043, %v1043
    %1050 = vrot.lane.b32.xlu0 %v1047, 1
    %v1051 = vpop.permute.xlu0 %1050
    %1052 = vrot.lane.b32.xlu0 %v1041, 1
    %v1053 = vpop.permute.xlu0 %1052
    %1054 = vrot.lane.b32.xlu0 %v1048, 1
    %v1055 = vpop.permute.xlu0 %1054
    %1056 = vrot.lane.b32.xlu0 %v1042, 1
    %v1057 = vpop.permute.xlu0 %1056
    %1058 = vrot.lane.b32.xlu0 %v1049, 1
    %v1059 = vpop.permute.xlu0 %1058
    %v1060 = vsel %vm320, %v1051, %v1053
    %v1061 = vsel %vm320, %v1053, %v1055
    %v1062 = vsel %vm320, %v1055, %v1057
    %v1063 = vsel %vm320, %v1057, %v1059
    %1068 = vst [vmem:[#allocation3 + $0x20] sm:$0xf0] %v1060
    %1069 = vst [vmem:[#allocation3 + $0x28] sm:$0xf0] %v1061
    %1070 = vst [vmem:[#allocation3 + $0x30] sm:$0xf0] %v1062
    %1071 = vst [vmem:[#allocation3 + $0x38] sm:$0xf0] %v1063
    %v1072 = vld [vmem:[#allocation2 + $0x4] sm:$0xff]
    %v1073 = vld [vmem:[#allocation2 + $0xc] sm:$0xff]
    %v1076 = vcombine.high %v1072, %v1072
    %v1077 = vcombine.high %v1073, %v1073
    %1080 = vst [vmem:[#allocation3 + $0x40] sm:$0xf] %v1072
    %1081 = vst [vmem:[#allocation3 + $0x48] sm:$0xf] %v1076
    %1082 = vst [vmem:[#allocation3 + $0x50] sm:$0xf] %v1073
    %1083 = vst [vmem:[#allocation3 + $0x58] sm:$0xf] %v1077
    %v1084 = vld [vmem:[#allocation2 + $0x4] sm:$0xff]
    %v1085 = vld [vmem:[#allocation2 + $0xc] sm:$0xff]
    %v1086 = vld [vmem:[#allocation2 + $0x14] sm:$0xf]
    %v1087 = vld [vmem:[%s348] ss:$8 sm:$0xf]
    %v1089 = vlaneseq
    %v1090 = vshrl.u32 %v1089, 7
    %v1091 = vsub.s32 0, %v1090
    %v1092 = vrot.slane %v1087, %v1091
    %v1093 = vlaneseq
    %v1094 = vshrl.u32 %v1093, 7
    %v1095 = vsub.s32 1, %v1094
    %v1096 = vrot.slane %v1087, %v1095
    %v1097 = vlaneseq
    %v1098 = vshrl.u32 %v1097, 7
    %v1099 = vsub.s32 2, %v1098
    %v1100 = vrot.slane %v1087, %v1099
    %v1101 = vlaneseq
    %v1102 = vshrl.u32 %v1101, 7
    %v1103 = vsub.s32 3, %v1102
    %v1104 = vrot.slane %v1087, %v1103
    %v1105 = vcombine.low %v1092, %v1096
    %v1106 = vcombine.low %v1100, %v1104
    %1107 = vrot.lane.b32.xlu0 %v1105, 1
    %v1108 = vpop.permute.xlu0 %1107
    %1109 = vrot.lane.b32.xlu0 %v1106, 1
    %v1110 = vpop.permute.xlu0 %1109
    %v1111 = vrot.slane %v1108, 4
    %v1112 = vrot.slane %v1110, 4
    %v1113 = vsel %vm320, %v1111, %v1108
    %v1114 = vsel %vm90, %v1111, %v1112
    %v1115 = vsel %vm320, %v1114, %v1110
    %v1119 = vmul.f32 %v1084, %v1113
    %v1120 = vmul.f32 %v1085, %v1115
    %v1121 = vmul.f32 %v1086, %v1112
    %v1125 = vcombine.low %v1119, %v1119
    %v1126 = vcombine.low %v1120, %v1120
    %v1127 = vcombine.low %v1121, %v1121
    %1128 = vrot.lane.b32.xlu0 %v1125, 127
    %v1129 = vpop.permute.xlu0 %1128
    %1130 = vrot.lane.b32.xlu0 %v1119, 127
    %v1131 = vpop.permute.xlu0 %1130
    %1132 = vrot.lane.b32.xlu0 %v1126, 127
    %v1133 = vpop.permute.xlu0 %1132
    %1134 = vrot.lane.b32.xlu0 %v1120, 127
    %v1135 = vpop.permute.xlu0 %1134
    %1136 = vrot.lane.b32.xlu0 %v1127, 127
    %v1137 = vpop.permute.xlu0 %1136
    %v1138 = vsel %vm294, %v1129, %v1131
    %v1139 = vsel %vm294, %v1131, %v1133
    %v1140 = vsel %vm294, %v1133, %v1135
    %v1141 = vsel %vm294, %v1135, %v1137
    %1146 = vst [vmem:[#allocation3 + $0x40] sm:$0xf0] %v1138
    %1147 = vst [vmem:[#allocation3 + $0x48] sm:$0xf0] %v1139
    %1148 = vst [vmem:[#allocation3 + $0x50] sm:$0xf0] %v1140
    %1149 = vst [vmem:[#allocation3 + $0x58] sm:$0xf0] %v1141
    %v1150 = vld [vmem:[#allocation2 + $0x4] sm:$0xff]
    %v1151 = vld [vmem:[#allocation2 + $0xc] sm:$0xff]
    %v1152 = vld [vmem:[#allocation2 + $0x14] sm:$0xf]
    %v1153 = vld [vmem:[%s415] ss:$8 sm:$0xf]
    %v1155 = vlaneseq
    %v1156 = vshrl.u32 %v1155, 7
    %v1157 = vsub.s32 0, %v1156
    %v1158 = vrot.slane %v1153, %v1157
    %v1159 = vlaneseq
    %v1160 = vshrl.u32 %v1159, 7
    %v1161 = vsub.s32 1, %v1160
    %v1162 = vrot.slane %v1153, %v1161
    %v1163 = vlaneseq
    %v1164 = vshrl.u32 %v1163, 7
    %v1165 = vsub.s32 2, %v1164
    %v1166 = vrot.slane %v1153, %v1165
    %v1167 = vlaneseq
    %v1168 = vshrl.u32 %v1167, 7
    %v1169 = vsub.s32 3, %v1168
    %v1170 = vrot.slane %v1153, %v1169
    %v1171 = vcombine.low %v1158, %v1162
    %v1172 = vcombine.low %v1166, %v1170
    %1173 = vrot.lane.b32.xlu0 %v1171, 15
    %v1174 = vpop.permute.xlu0 %1173
    %1175 = vrot.lane.b32.xlu0 %v1172, 15
    %v1176 = vpop.permute.xlu0 %1175
    %v1177 = vrot.slane %v1174, 4
    %v1178 = vrot.slane %v1176, 4
    %v1179 = vsel %vm251, %v1177, %v1174
    %v1180 = vsel %vm90, %v1177, %v1178
    %v1181 = vsel %vm251, %v1180, %v1176
    %v1185 = vmul.f32 %v1150, %v1179
    %v1186 = vmul.f32 %v1151, %v1181
    %v1187 = vmul.f32 %v1152, %v1178
    %v1191 = vcombine.high %v1185, %v1185
    %v1192 = vcombine.high %v1186, %v1186
    %1193 = vrot.lane.b32.xlu0 %v1185, 113
    %v1194 = vpop.permute.xlu0 %1193
    %1195 = vrot.lane.b32.xlu0 %v1191, 113
    %v1196 = vpop.permute.xlu0 %1195
    %1197 = vrot.lane.b32.xlu0 %v1186, 113
    %v1198 = vpop.permute.xlu0 %1197
    %1199 = vrot.lane.b32.xlu0 %v1192, 113
    %v1200 = vpop.permute.xlu0 %1199
    %1201 = vrot.lane.b32.xlu0 %v1187, 113
    %v1202 = vpop.permute.xlu0 %1201
    %v1203 = vsel %vm226, %v1194, %v1196
    %v1204 = vsel %vm226, %v1196, %v1198
    %v1205 = vsel %vm226, %v1198, %v1200
    %v1206 = vsel %vm226, %v1200, %v1202
    %1211 = vst [vmem:[#allocation3 + $0x60] sm:$0xf] %v1203
    %1212 = vst [vmem:[#allocation3 + $0x68] sm:$0xf] %v1204
    %1213 = vst [vmem:[#allocation3 + $0x70] sm:$0xf] %v1205
    %1214 = vst [vmem:[#allocation3 + $0x78] sm:$0xf] %v1206
    %v1215 = vld [vmem:[#allocation2 + $0x4] sm:$0xff]
    %v1216 = vld [vmem:[#allocation2 + $0xc] sm:$0xff]
    %v1217 = vld [vmem:[#allocation2 + $0x14] sm:$0xf]
    %v1218 = vld [vmem:[%s481] ss:$8 sm:$0xf]
    %v1220 = vlaneseq
    %v1221 = vshrl.u32 %v1220, 7
    %v1222 = vsub.s32 0, %v1221
    %v1223 = vrot.slane %v1218, %v1222
    %v1224 = vlaneseq
    %v1225 = vshrl.u32 %v1224, 7
    %v1226 = vsub.s32 1, %v1225
    %v1227 = vrot.slane %v1218, %v1226
    %v1228 = vlaneseq
    %v1229 = vshrl.u32 %v1228, 7
    %v1230 = vsub.s32 2, %v1229
    %v1231 = vrot.slane %v1218, %v1230
    %v1232 = vlaneseq
    %v1233 = vshrl.u32 %v1232, 7
    %v1234 = vsub.s32 3, %v1233
    %v1235 = vrot.slane %v1218, %v1234
    %v1236 = vcombine.low %v1223, %v1227
    %v1237 = vcombine.low %v1231, %v1235
    %1238 = vrot.lane.b32.xlu0 %v1236, 16
    %v1239 = vpop.permute.xlu0 %1238
    %1240 = vrot.lane.b32.xlu0 %v1237, 16
    %v1241 = vpop.permute.xlu0 %1240
    %v1242 = vrot.slane %v1239, 4
    %v1243 = vrot.slane %v1241, 4
    %v1244 = vsel %vm183, %v1242, %v1239
    %v1245 = vsel %vm90, %v1242, %v1243
    %v1246 = vsel %vm183, %v1245, %v1241
    %v1250 = vmul.f32 %v1215, %v1244
    %v1251 = vmul.f32 %v1216, %v1246
    %v1252 = vmul.f32 %v1217, %v1243
    %v1256 = vcombine.low %v1250, %v1250
    %v1257 = vcombine.low %v1251, %v1251
    %v1258 = vcombine.low %v1252, %v1252
    %1259 = vrot.lane.b32.xlu0 %v1256, 112
    %v1260 = vpop.permute.xlu0 %1259
    %1261 = vrot.lane.b32.xlu0 %v1250, 112
    %v1262 = vpop.permute.xlu0 %1261
    %1263 = vrot.lane.b32.xlu0 %v1257, 112
    %v1264 = vpop.permute.xlu0 %1263
    %1265 = vrot.lane.b32.xlu0 %v1251, 112
    %v1266 = vpop.permute.xlu0 %1265
    %1267 = vrot.lane.b32.xlu0 %v1258, 112
    %v1268 = vpop.permute.xlu0 %1267
    %v1269 = vsel %vm157, %v1260, %v1262
    %v1270 = vsel %vm157, %v1262, %v1264
    %v1271 = vsel %vm157, %v1264, %v1266
    %v1272 = vsel %vm157, %v1266, %v1268
    %1277 = vst [vmem:[#allocation3 + $0x60] sm:$0xf0] %v1269
    %1278 = vst [vmem:[#allocation3 + $0x68] sm:$0xf0] %v1270
    %1279 = vst [vmem:[#allocation3 + $0x70] sm:$0xf0] %v1271
    %1280 = vst [vmem:[#allocation3 + $0x78] sm:$0xf0] %v1272
    %v1281 = vld [vmem:[#allocation2 + $0x4] sm:$0xff]
    %v1282 = vld [vmem:[#allocation2 + $0xc] sm:$0xff]
    %v1283 = vld [vmem:[#allocation2 + $0x14] sm:$0xf]
    %v1284 = vld [vmem:[%s548] ss:$8 sm:$0xf]
    %v1286 = vlaneseq
    %v1287 = vshrl.u32 %v1286, 7
    %v1288 = vsub.s32 0, %v1287
    %v1289 = vrot.slane %v1284, %v1288
    %v1290 = vlaneseq
    %v1291 = vshrl.u32 %v1290, 7
    %v1292 = vsub.s32 1, %v1291
    %v1293 = vrot.slane %v1284, %v1292
    %v1294 = vlaneseq
    %v1295 = vshrl.u32 %v1294, 7
    %v1296 = vsub.s32 2, %v1295
    %v1297 = vrot.slane %v1284, %v1296
    %v1298 = vlaneseq
    %v1299 = vshrl.u32 %v1298, 7
    %v1300 = vsub.s32 3, %v1299
    %v1301 = vrot.slane %v1284, %v1300
    %v1302 = vcombine.low %v1289, %v1293
    %v1303 = vcombine.low %v1297, %v1301
    %1304 = vrot.lane.b32.xlu0 %v1302, 17
    %v1305 = vpop.permute.xlu0 %1304
    %1306 = vrot.lane.b32.xlu0 %v1303, 17
    %v1307 = vpop.permute.xlu0 %1306
    %v1308 = vrot.slane %v1305, 4
    %v1309 = vrot.slane %v1307, 4
    %v1310 = vsel %vm114, %v1308, %v1305
    %v1311 = vsel %vm90, %v1308, %v1309
    %v1312 = vsel %vm114, %v1311, %v1307
    %v1316 = vmul.f32 %v1281, %v1310
    %v1317 = vmul.f32 %v1282, %v1312
    %v1318 = vmul.f32 %v1283, %v1309
    %v1322 = vcombine.high %v1316, %v1316
    %v1323 = vcombine.high %v1317, %v1317
    %1324 = vrot.lane.b32.xlu0 %v1316, 111
    %v1325 = vpop.permute.xlu0 %1324
    %1326 = vrot.lane.b32.xlu0 %v1322, 111
    %v1327 = vpop.permute.xlu0 %1326
    %1328 = vrot.lane.b32.xlu0 %v1317, 111
    %v1329 = vpop.permute.xlu0 %1328
    %1330 = vrot.lane.b32.xlu0 %v1323, 111
    %v1331 = vpop.permute.xlu0 %1330
    %1332 = vrot.lane.b32.xlu0 %v1318, 111
    %v1333 = vpop.permute.xlu0 %1332
    %v1334 = vsel %vm88, %v1325, %v1327
    %v1335 = vsel %vm88, %v1327, %v1329
    %v1336 = vsel %vm88, %v1329, %v1331
    %v1337 = vsel %vm88, %v1331, %v1333
    %1342 = vst [vmem:[#allocation3 + $0x80] sm:$0xf] %v1334
    %1343 = vst [vmem:[#allocation3 + $0x88] sm:$0xf] %v1335
    %1344 = vst [vmem:[#allocation3 + $0x90] sm:$0xf] %v1336
    %1345 = vst [vmem:[#allocation3 + $0x98] sm:$0xf] %v1337
    %v1346 = vld [vmem:[%s3] sm:$0xf]
    %v1347 = vld [vmem:[#allocation3] sm:$0xff]
    %v1348 = vld [vmem:[#allocation3 + $0x8] sm:$0xff]
    %v1349 = vld [vmem:[#allocation3 + $0x10] sm:$0xff]
    %v1350 = vld [vmem:[#allocation3 + $0x18] sm:$0xff]
    %v1351 = vld [vmem:[#allocation3 + $0x20] sm:$0xff]
    %v1352 = vld [vmem:[#allocation3 + $0x28] sm:$0xff]
    %v1353 = vld [vmem:[#allocation3 + $0x30] sm:$0xff]
    %v1354 = vld [vmem:[#allocation3 + $0x38] sm:$0xff]
    %v1355 = vld [vmem:[#allocation3 + $0x40] sm:$0xff]
    %v1356 = vld [vmem:[#allocation3 + $0x48] sm:$0xff]
    %v1357 = vld [vmem:[#allocation3 + $0x50] sm:$0xff]
    %v1358 = vld [vmem:[#allocation3 + $0x58] sm:$0xff]
    %v1359 = vld [vmem:[#allocation3 + $0x60] sm:$0xff]
    %v1360 = vld [vmem:[#allocation3 + $0x68] sm:$0xff]
    %v1361 = vld [vmem:[#allocation3 + $0x70] sm:$0xff]
    %v1362 = vld [vmem:[#allocation3 + $0x78] sm:$0xff]
    %v1363 = vld [vmem:[#allocation3 + $0x80] sm:$0xf]
    %v1364 = vld [vmem:[#allocation3 + $0x88] sm:$0xf]
    %v1365 = vld [vmem:[#allocation3 + $0x90] sm:$0xf]
    %v1366 = vld [vmem:[#allocation3 + $0x98] sm:$0xf]
    %v1367 = vld [vmem:[%s4] sm:$0xf]
    %1369 = vset.pattern.permute.xlu0 0
    %1370 = vperm.xlu0 %1369, %v1367
    %v1371 = vpop.permute.xlu0 %1370
    %v1374 = vsel %vm638, %v1346, 0
    %v1377 = vsel %vm90, %v1363, 0
    %v1380 = vsel %vm90, %v1364, 0
    %v1383 = vsel %vm90, %v1365, 0
    %v1386 = vsel %vm90, %v1366, 0
    %1388 = vmatprep.subr.mxu0 %v1348
    %1389 = vmatpush1.msra.mxu0 %v1347
    %1390 = vmatprep.subr.mxu0 %v1352
    %1391 = vmatpush1.msra.mxu0 %v1351
    %1392 = vmatprep.subr.mxu0 %v1356
    %1393 = vmatpush1.msra.mxu0 %v1355
    %1394 = vmatprep.subr.mxu0 %v1360
    %1395 = vmatpush1.msra.mxu0 %v1359
    %1396 = vmatprep.subr.mxu0 %v1380
    %1397 = vmatpush1.msra.mxu0 %v1377
    %1398 = vmatprep.subr.mxu0 0.0
    %1399 = vmatpush1.msra.mxu0 0.0
    %1400 = vmatprep.subr.mxu0 0.0
    %1401 = vmatpush1.msra.mxu0 0.0
    %1402 = vmatprep.subr.mxu0 0.0
    %1403 = vmatpush1.msra.mxu0 0.0
    %1404 = vmatprep.subr.mxu0 0.0
    %1405 = vmatpush1.msra.mxu0 0.0
    %1406 = vmatprep.subr.mxu0 0.0
    %1407 = vmatpush1.msra.mxu0 0.0
    %1408 = vmatprep.subr.mxu0 0.0
    %1409 = vmatpush1.msra.mxu0 0.0
    %1410 = vmatprep.subr.mxu0 0.0
    %1411 = vmatpush1.msra.mxu0 0.0
    %1412 = vmatprep.subr.mxu0 0.0
    %1413 = vmatpush1.msra.mxu0 0.0
    %1414 = vmatprep.subr.mxu0 0.0
    %1415 = vmatpush1.msra.mxu0 0.0
    %1416 = vmatprep.subr.mxu0 0.0
    %1417 = vmatpush1.msra.mxu0 0.0
    %1418 = vmatprep.subr.mxu0 0.0
    %1419 = vmatpush1.msra.mxu0 0.0
    %1420 = vmatprep.subr.mxu0 0.0
    %1421 = vmatpush1.msra.mxu0 0.0
    %1422 = vmatprep.subr.mxu0 0.0
    %1423 = vmatpush1.msra.mxu0 0.0
    %1424 = vmatprep.subr.mxu0 0.0
    %1425 = vmatpush1.msra.mxu0 0.0
    %1426 = vmatprep.subr.mxu0 0.0
    %1427 = vmatpush1.msra.mxu0 0.0
    %1428 = vmatprep.subr.mxu0 0.0
    %1429 = vmatpush1.msra.mxu0 0.0
    %1430 = vmatprep.subr.mxu0 0.0
    %1431 = vmatpush1.msra.mxu0 0.0
    %1432 = vmatprep.subr.mxu0 0.0
    %1433 = vmatpush1.msra.mxu0 0.0
    %1434 = vmatprep.subr.mxu0 0.0
    %1435 = vmatpush1.msra.mxu0 0.0
    %1436 = vmatprep.subr.mxu0 0.0
    %1437 = vmatpush1.msra.mxu0 0.0
    %1438 = vmatprep.subr.mxu0 0.0
    %1439 = vmatpush1.msra.mxu0 0.0
    %1440 = vmatprep.subr.mxu0 0.0
    %1441 = vmatpush1.msra.mxu0 0.0
    %1442 = vmatprep.subr.mxu0 0.0
    %1443 = vmatpush1.msra.mxu0 0.0
    %1444 = vmatprep.subr.mxu0 0.0
    %1445 = vmatpush1.msra.mxu0 0.0
    %1446 = vmatprep.subr.mxu0 0.0
    %1447 = vmatpush1.msra.mxu0 0.0
    %1448 = vmatprep.subr.mxu0 0.0
    %1449 = vmatpush1.msra.mxu0 0.0
    %1450 = vmatprep.subr.mxu0 0.0
    %1451 = vmatpush1.msra.mxu0 0.0
    %1452 = vmatprep.mubr.f32.mxu0 0.0
    %1453 = vmatmul.mubr.f32.gmra.mrb[0].mxu0 %v1374
    %v1454 = vpop.f32.mrb[0].mxu0
    %v1455 = vadd.f32 %v1371, %v1454
    %v1456 = vpop.f32.mrb[0].mxu0
    %v1457 = vadd.f32 %v1371, %v1456
    %1458 = vdwg.mxu0
    %1459 = vmatprep.subr.mxu0 %v1350
    %1460 = vmatpush1.msra.mxu0 %v1349
    %1461 = vmatprep.subr.mxu0 %v1354
    %1462 = vmatpush1.msra.mxu0 %v1353
    %1463 = vmatprep.subr.mxu0 %v1358
    %1464 = vmatpush1.msra.mxu0 %v1357
    %1465 = vmatprep.subr.mxu0 %v1362
    %1466 = vmatpush1.msra.mxu0 %v1361
    %1467 = vmatprep.subr.mxu0 %v1386
    %1468 = vmatpush1.msra.mxu0 %v1383
    %1469 = vmatprep.subr.mxu0 0.0
    %1470 = vmatpush1.msra.mxu0 0.0
    %1471 = vmatprep.subr.mxu0 0.0
    %1472 = vmatpush1.msra.mxu0 0.0
    %1473 = vmatprep.subr.mxu0 0.0
    %1474 = vmatpush1.msra.mxu0 0.0
    %1475 = vmatprep.subr.mxu0 0.0
    %1476 = vmatpush1.msra.mxu0 0.0
    %1477 = vmatprep.subr.mxu0 0.0
    %1478 = vmatpush1.msra.mxu0 0.0
    %1479 = vmatprep.subr.mxu0 0.0
    %1480 = vmatpush1.msra.mxu0 0.0
    %1481 = vmatprep.subr.mxu0 0.0
    %1482 = vmatpush1.msra.mxu0 0.0
    %1483 = vmatprep.subr.mxu0 0.0
    %1484 = vmatpush1.msra.mxu0 0.0
    %1485 = vmatprep.subr.mxu0 0.0
    %1486 = vmatpush1.msra.mxu0 0.0
    %1487 = vmatprep.subr.mxu0 0.0
    %1488 = vmatpush1.msra.mxu0 0.0
    %1489 = vmatprep.subr.mxu0 0.0
    %1490 = vmatpush1.msra.mxu0 0.0
    %1491 = vmatprep.subr.mxu0 0.0
    %1492 = vmatpush1.msra.mxu0 0.0
    %1493 = vmatprep.subr.mxu0 0.0
    %1494 = vmatpush1.msra.mxu0 0.0
    %1495 = vmatprep.subr.mxu0 0.0
    %1496 = vmatpush1.msra.mxu0 0.0
    %1497 = vmatprep.subr.mxu0 0.0
    %1498 = vmatpush1.msra.mxu0 0.0
    %1499 = vmatprep.subr.mxu0 0.0
    %1500 = vmatpush1.msra.mxu0 0.0
    %1501 = vmatprep.subr.mxu0 0.0
    %1502 = vmatpush1.msra.mxu0 0.0
    %1503 = vmatprep.subr.mxu0 0.0
    %1504 = vmatpush1.msra.mxu0 0.0
    %1505 = vmatprep.subr.mxu0 0.0
    %1506 = vmatpush1.msra.mxu0 0.0
    %1507 = vmatprep.subr.mxu0 0.0
    %1508 = vmatpush1.msra.mxu0 0.0
    %1509 = vmatprep.subr.mxu0 0.0
    %1510 = vmatpush1.msra.mxu0 0.0
    %1511 = vmatprep.subr.mxu0 0.0
    %1512 = vmatpush1.msra.mxu0 0.0
    %1513 = vmatprep.subr.mxu0 0.0
    %1514 = vmatpush1.msra.mxu0 0.0
    %1515 = vmatprep.subr.mxu0 0.0
    %1516 = vmatpush1.msra.mxu0 0.0
    %1517 = vmatprep.subr.mxu0 0.0
    %1518 = vmatpush1.msra.mxu0 0.0
    %1519 = vmatprep.subr.mxu0 0.0
    %1520 = vmatpush1.msra.mxu0 0.0
    %1521 = vmatprep.subr.mxu0 0.0
    %1522 = vmatpush1.msra.mxu0 0.0
    %1523 = vmatprep.mubr.f32.mxu0 0.0
    %1524 = vmatmul.mubr.f32.gmra.mrb[0].mxu0 %v1374
    %v1525 = vpop.f32.mrb[0].mxu0
    %v1526 = vadd.f32 %v1371, %v1525
    %v1527 = vpop.f32.mrb[0].mxu0
    %v1528 = vadd.f32 %v1371, %v1527
    %1529 = vdwg.mxu0
    %v1530 = vld [vmem:[#allocation4] sm:$0xff]
    %v1532 = vcombine.high %v1530, %v1530
    %v1534 = vadd.f32 %v1455, %v1530
    %v1535 = vadd.f32 %v1457, %v1532
    %v1538 = vcombine.low %v1534, %v1535
    %1540 = vst [vmem:[#allocation9] sm:$0xff] %v1538
    %v1541 = vld [vmem:[%s56] sm:$0xff]
    %v1543 = vcombine.high %v1541, %v1541
    %v1545 = vadd.f32 %v1526, %v1541
    %v1546 = vadd.f32 %v1528, %v1543
    %v1549 = vcombine.low %v1545, %v1546
    %s1551 = scalar_lea.vmem [#allocation9], 8
    %1552 = vst [vmem:[%s1551] sm:$0xff] %v1549
    // Predicated region
    $region34: #{tpu_custom_call.1} parent=1 // pred_check
      _
    $region35: #{tpu_custom_call.1} parent=1 // pred_check_branch
      %1554 = sbr.rel (0) target = $region37
    $region36: #{tpu_custom_call.1} parent=1 // pred_region
      %s1556 = ssub.s32 256, 256
      %1557 = vsyncadd [#allocation6], %s1556
      %s1558 = sshll.u32 [#allocation9], 4
      %s1559 = int_to_ptr.vmem [resolvable:$true] %s1558
      %1564 = dma.vmem_to_hbm [thread:$0]  %s1559, 256, %s6, [#allocation6], 128, 128, 8
    $region37: #{tpu_custom_call.1} parent=1 // pred_fallthru
      _
    // Predicated region
    $region38: #{tpu_custom_call.1} parent=1 // pred_check
      _
    $region39: #{tpu_custom_call.1} parent=1 // pred_check_branch
      %1566 = sbr.rel (0) target = $region41
    $region40: #{tpu_custom_call.1} parent=1 // pred_region
      %1567 = dma.done [#allocation6], 256
    $region41: #{tpu_custom_call.1} parent=1 // pred_fallthru
      _
    %1568 = vsyncpa [#allocation5], 1
    %1569 = vsyncpa [#allocation8], 1
    %1570 = vsyncpa [#allocation6], 1

</llo_original>
